<compile_context>
chip_gen: v5e
topology: v5e:2x2
jax: 0.10.0
libtpu: 0.0.40
codegen_flags: <defaults>
</compile_context>

<pallas_src>
import functools

import jax
import jax.numpy as jnp
from jax import lax
from jax.experimental import pallas as pl
from jax.experimental.pallas import tpu as pltpu


def _round_up(x, m):
    return ((x + m - 1) // m) * m


def _make_kernel(k, wp, tq):
    """Fused CondConv+BN+ReLU6 kernel for static geometry (k, padded width, tile)."""

    def kernel(w_ref, xcur_ref, xhalo_ref, shift_ref, out_ref):
        # w_ref    : (1, k*k, Cout_p, t_ci) bf16  per-sample weights, BN scale folded
        # xcur_ref : (1, t_ci, tq)          bf16  flat padded image, current tile
        # xhalo_ref: (1, t_ci, halo_r)      bf16  flat padded image, halo after tile
        # shift_ref: (Cout_p, 1)            f32   BN shift = beta - mean * scale
        # out_ref  : (1, Cout_p, tq)        f32   wide-output tile (accumulator)
        ci = pl.program_id(2)

        @pl.when(ci == 0)
        def _():
            out_ref[...] = jnp.zeros_like(out_ref)

        # (t_ci, tq + halo_r); the boundary tq is lane-aligned (multiple of 128).
        xt = jnp.concatenate([xcur_ref[0], xhalo_ref[0]], axis=1)

        # k*k shifted-window matmuls, accumulated in f32 directly in out_ref.
        for kh in range(k):
            for kw in range(k):
                off = kh * wp + kw                      # static shift
                xs = xt[:, off:off + tq]                # (t_ci, tq), static slice
                out_ref[0] += lax.dot_general(
                    w_ref[0, kh * k + kw], xs,
                    (((1,), (0,)), ((), ())),
                    preferred_element_type=jnp.float32)

        @pl.when(ci == pl.num_programs(2) - 1)
        def _():
            y = out_ref[0] + shift_ref[...]             # BN shift (scale folded)
            out_ref[0] = jnp.minimum(jnp.maximum(y, 0.0), 6.0)   # ReLU6

    return kernel


@functools.partial(jax.jit, static_argnames=("kernel_size", "stride"))
def cond_conv_bn_relu6(x, routing_weight, expert_weight,
                       bn_gamma, bn_beta, bn_mean, bn_var,
                       kernel_size=3, stride=1, eps=1e-5):
    """Forward of CondConvBNReLUV2 (groups=1, bias=False).

    x             : (B, Cin, H, W)  float32 (NCHW, as in PyTorch)
    routing_weight: (B, E)
    expert_weight : (E, Cout, Cin, k, k)
    returns       : (B, Cout, Ho, Wo) NCHW
    """
    B, Cin, H, W = x.shape
    E, Cout = expert_weight.shape[0], expert_weight.shape[1]
    k = kernel_size
    pad = (k - 1) // 2

    # ---------------- wrapper-side prep (plain XLA) ----------------
    # Fold BN (inference stats): scale goes into the weights, shift stays.
    scale = (bn_gamma / jnp.sqrt(bn_var + eps)).astype(jnp.float32)      # (Cout,)
    shift = (bn_beta - bn_mean * scale).astype(jnp.float32)              # (Cout,)

    # Expert combination hoisted out of the kernel: one (B,E)x(E,...) GEMM.
    wflat = (expert_weight.astype(jnp.float32)
             * scale[None, :, None, None, None]).reshape(E, -1)
    w_comb = (routing_weight.astype(jnp.float32) @ wflat
              ).reshape(B, Cout, Cin, k, k)
    # (B, k*k, Cout, Cin): static kernel-offset leading index for the kernel.
    w_k = jnp.transpose(w_comb, (0, 3, 4, 1, 2)).reshape(B, k * k, Cout, Cin)

    # ---------------- geometry (stride-1 "wide output" formulation) ----------
    Hp, Wp = H + 2 * pad, W + 2 * pad
    Ho, Wo = Hp - k + 1, Wp - k + 1          # stride-1 output sizes
    Q = Ho * Wp                               # wide output positions per sample
    halo = (k - 1) * Wp + (k - 1)             # max static shift inside a tile
    halo_r = max(128, _round_up(halo, 128))

    # ---------------- tiling / padding ----------------
    # 16-granular (bf16 sublane packing).  Padding Cout further to 128 would
    # only help MXU pass shape for very large Cout and inflates the f32 output
    # writeback of this HBM-bound kernel, so we keep 16.
    cout_p = _round_up(Cout, 16)
    cin_p = _round_up(Cin, 16)
    if cin_p > 512:                           # chunk the Cin reduction for huge Cin
        t_ci = 256
        cin_p = _round_up(Cin, t_ci)
    else:
        t_ci = cin_p

    # Lane tile of the wide output: target 1024, multiple of halo_r, bounded by
    # the f32 output block VMEM (~2 MiB) and by Q itself.
    tq_cap = max(halo_r, ((2 * 1024 * 1024) // (4 * cout_p)) // halo_r * halo_r)
    tq = min(1024, _round_up(Q, halo_r), tq_cap)
    if B == 1:  # keep >= 2 grid steps so both v7x TensorCores get work
        tq = min(tq, max(halo_r, _round_up((Q + 1) // 2, halo_r)))
    tq = max(halo_r, (tq // halo_r) * halo_r)
    q_pad = _round_up(Q, tq)
    n_q = q_pad // tq
    l_pad = q_pad + halo_r                    # flat image length incl. last halo
    hsteps = tq // halo_r                     # halo blocks per output tile

    # Input: cast bf16 FIRST (only bf16 intermediates), pad channels + spatial,
    # flatten rows onto the lane axis, pad the flat tail.
    x_bf = x.astype(jnp.bfloat16)
    xp = jnp.pad(x_bf, ((0, 0), (0, cin_p - Cin), (pad, pad), (pad, pad)))
    x_flat = xp.reshape(B, cin_p, Hp * Wp)
    x_flat = jnp.pad(x_flat, ((0, 0), (0, 0), (0, l_pad - Hp * Wp)))

    w_k = jnp.pad(w_k, ((0, 0), (0, 0), (0, cout_p - Cout), (0, cin_p - Cin)))
    w_k = w_k.astype(jnp.bfloat16)
    shift_p = jnp.pad(shift, (0, cout_p - Cout)).reshape(cout_p, 1)

    grid = (B, n_q, cin_p // t_ci)

    # Rough per-step VMEM need (double-buffered blocks) -> explicit limit
    # (raises v5e's 16 MiB scoped default, stays within v7x's 64 MiB physical).
    step_bytes = 2 * (k * k * cout_p * t_ci * 2 + t_ci * tq * 2
                      + t_ci * halo_r * 2 + cout_p * tq * 4 + cout_p * 4)
    vmem_limit = int(min(64 * 1024 * 1024,
                         max(32 * 1024 * 1024, 2 * step_bytes)))

    kernel = _make_kernel(k, Wp, tq)

    out_wide = pl.pallas_call(
        kernel,
        out_shape=jax.ShapeDtypeStruct((B, cout_p, q_pad), jnp.float32),
        grid_spec=pltpu.PrefetchScalarGridSpec(
            num_scalar_prefetch=0,
            grid=grid,
            in_specs=[
                # Per-sample combined weights: index constant across the spatial
                # axis -> VMEM-resident, fetched once per sample (per Cin chunk).
                pl.BlockSpec((1, k * k, cout_p, t_ci),
                             lambda b, q, c: (b, 0, 0, c)),
                # Current flat-image tile.
                pl.BlockSpec((1, t_ci, tq), lambda b, q, c: (b, c, q)),
                # Halo: the first halo_r lanes of the *next* tile (same array).
                pl.BlockSpec((1, t_ci, halo_r),
                             lambda b, q, c: (b, c, (q + 1) * hsteps)),
                # BN shift.
                pl.BlockSpec((cout_p, 1), lambda b, q, c: (0, 0)),
            ],
            out_specs=pl.BlockSpec((1, cout_p, tq), lambda b, q, c: (b, 0, q)),
        ),
        compiler_params=pltpu.CompilerParams(
            dimension_semantics=("parallel", "parallel", "arbitrary"),
            vmem_limit_bytes=vmem_limit),
    )(w_k, x_flat, x_flat, shift_p)

    # Wide output -> valid output: crop garbage columns / padded rows.
    out = out_wide[:, :Cout, :Q].reshape(B, Cout, Ho, Wp)[:, :, :, :Wo]
    if stride > 1:
        # TODO(synk): stride>1 computes the stride-1 result and subsamples.
        out = out[:, :, ::stride, ::stride]
    return out.astype(x.dtype)


def _reference(x, routing_weight, expert_weight,
               bn_gamma, bn_beta, bn_mean, bn_var,
               kernel_size=3, stride=1, eps=1e-5):
    """Plain-JAX f32 reference (per-sample combined-kernel conv + BN + ReLU6)."""
    B = x.shape[0]
    k = kernel_size
    padding = (k - 1) // 2
    outs = []
    for b in range(B):
        w_b = jnp.einsum('e,eoihw->oihw', routing_weight[b], expert_weight)
        y = jax.lax.conv_general_dilated(
            x[b:b + 1], w_b, window_strides=(stride, stride),
            padding=[(padding, padding), (padding, padding)],
            dimension_numbers=('NCHW', 'OIHW', 'NCHW'))
        outs.append(y)
    y = jnp.concatenate(outs, axis=0)
    scale = bn_gamma / jnp.sqrt(bn_var + eps)
    shift = bn_beta - bn_mean * scale
    y = y * scale[None, :, None, None] + shift[None, :, None, None]
    return jnp.clip(y, 0.0, 6.0)


if __name__ == "__main__":
    key = jax.random.PRNGKey(0)
    kx, kr, kw, kg, kb, km, kv = jax.random.split(key, 7)

    # Small shapes consistent with the module (groups=1, kernel_size=3, stride=1).
    B, Cin, H, W = 2, 4, 16, 16
    Cout, E, K = 8, 8, 3

    x = jax.random.normal(kx, (B, Cin, H, W), dtype=jnp.float32)
    routing = jax.nn.softmax(
        jax.random.normal(kr, (B, E), dtype=jnp.float32), axis=-1)
    expert_w = 0.1 * jax.random.normal(kw, (E, Cout, Cin, K, K), dtype=jnp.float32)
    bn_gamma = 1.0 + 0.1 * jax.random.normal(kg, (Cout,), dtype=jnp.float32)
    bn_beta = 0.1 * jax.random.normal(kb, (Cout,), dtype=jnp.float32)
    bn_mean = 0.1 * jax.random.normal(km, (Cout,), dtype=jnp.float32)
    bn_var = jax.random.uniform(kv, (Cout,), minval=0.5, maxval=1.5,
                                dtype=jnp.float32)

    out = cond_conv_bn_relu6(x, routing, expert_w,
                             bn_gamma, bn_beta, bn_mean, bn_var,
                             kernel_size=K, stride=1)
    out = jax.block_until_ready(out)

    ref = _reference(x, routing, expert_w,
                     bn_gamma, bn_beta, bn_mean, bn_var,
                     kernel_size=K, stride=1)
    assert out.shape == (B, Cout, H, W), out.shape
    # bf16 MXU inputs (f32 accumulation) => loosened tolerance vs f32 reference.
    max_err = float(jnp.max(jnp.abs(out - ref)))
    assert jnp.allclose(out, ref, atol=3e-2, rtol=3e-2), max_err

    print("KERNEL_OK")
</pallas_src>

<mosaic_0001>
module attributes {stable_mosaic.version = 11 : i64} {
  func.func @kernel(%arg0: i32, %arg1: i32, %arg2: i32, %arg3: memref<1x9x16x16xbf16, #tpu.memory_space<vmem>>, %arg4: memref<1x16x384xbf16, #tpu.memory_space<vmem>>, %arg5: memref<1x16x128xbf16, #tpu.memory_space<vmem>>, %arg6: memref<16x1xf32, #tpu.memory_space<vmem>>, %arg7: memref<1x16x384xf32, #tpu.memory_space<vmem>>) attributes {dimension_semantics = [#tpu.dimension_semantics<parallel>, #tpu.dimension_semantics<parallel>, #tpu.dimension_semantics<arbitrary>], iteration_bounds = array<i64: 2, 1, 1>, scalar_prefetch = 0 : i64, scratch_operands = 0 : i64, tpu.core_type = #tpu.core_type<tc>, window_params = [{transform_indices = @transform_0, window_bounds = array<i64: 1, 9, 16, 16>}, {transform_indices = @transform_1, window_bounds = array<i64: 1, 16, 384>}, {transform_indices = @transform_2, window_bounds = array<i64: 1, 16, 128>}, {pipeline_mode = #tpu.pipeline_mode<synchronous>, transform_indices = @transform_3, window_bounds = array<i64: 16, 1>}, {transform_indices = @transform_4, window_bounds = array<i64: 1, 16, 384>}]} {
    %c0_i32 = arith.constant 0 : i32
    %0 = arith.cmpi eq, %arg2, %c0_i32 : i32
    %1 = arith.extui %0 : i1 to i32
    %c0_i32_0 = arith.constant 0 : i32
    %2 = arith.cmpi ne, %1, %c0_i32_0 : i32
    scf.if %2 {
      %cst_98 = arith.constant 0.000000e+00 : f32
      %101 = vector.broadcast %cst_98 : f32 to vector<1x16x384xf32>
      %c0_99 = arith.constant 0 : index
      %c0_100 = arith.constant 0 : index
      %c0_101 = arith.constant 0 : index
      %102 = vector.load %arg7[%c0_99, %c0_100, %c0_101] : memref<1x16x384xf32, #tpu.memory_space<vmem>>, vector<1x16x384xf32>
      tpu.vector_store %arg7[%c0_99, %c0_100, %c0_101], %101 {strides = array<i32>} : memref<1x16x384xf32, #tpu.memory_space<vmem>>, vector<1x16x384xf32>,
    } else {
    }
    %c0 = arith.constant 0 : index
    %c0_1 = arith.constant 0 : index
    %c0_2 = arith.constant 0 : index
    %3 = vector.load %arg4[%c0, %c0_1, %c0_2] : memref<1x16x384xbf16, #tpu.memory_space<vmem>>, vector<1x16x384xbf16>
    %4 = vector.shape_cast %3 : vector<1x16x384xbf16> to vector<16x384xbf16>
    %c0_3 = arith.constant 0 : index
    %c0_4 = arith.constant 0 : index
    %c0_5 = arith.constant 0 : index
    %5 = vector.load %arg5[%c0_3, %c0_4, %c0_5] : memref<1x16x128xbf16, #tpu.memory_space<vmem>>, vector<1x16x128xbf16>
    %6 = vector.shape_cast %5 : vector<1x16x128xbf16> to vector<16x128xbf16>
    %7 = tpu.concatenate %4, %6 in 1 : vector<16x384xbf16>, vector<16x128xbf16> -> vector<16x512xbf16>
    %8 = vector.extract_strided_slice %7 {offsets = [0, 0], sizes = [16, 384], strides = [1, 1]} : vector<16x512xbf16> to vector<16x384xbf16>
    %c0_6 = arith.constant 0 : index
    %c0_7 = arith.constant 0 : index
    %c0_8 = arith.constant 0 : index
    %9 = vector.load %arg7[%c0_6, %c0_7, %c0_8] : memref<1x16x384xf32, #tpu.memory_space<vmem>>, vector<1x16x384xf32>
    %10 = vector.shape_cast %9 : vector<1x16x384xf32> to vector<16x384xf32>
    %c0_9 = arith.constant 0 : index
    %c0_10 = arith.constant 0 : index
    %c0_11 = arith.constant 0 : index
    %c0_12 = arith.constant 0 : index
    %11 = vector.load %arg3[%c0_9, %c0_10, %c0_11, %c0_12] : memref<1x9x16x16xbf16, #tpu.memory_space<vmem>>, vector<1x1x16x16xbf16>
    %12 = vector.shape_cast %11 : vector<1x1x16x16xbf16> to vector<16x16xbf16>
    %cst = arith.constant dense<0.000000e+00> : vector<16x384xf32>
    %13 = tpu.matmul %12, %8, %cst {dimension_numbers = #tpu.dot_dimension_numbers<[1], [0], [0], [1], [0, 0, 1, 1], [], []>} : vector<16x16xbf16>, vector<16x384xbf16>, vector<16x384xf32> -> vector<16x384xf32>
    %14 = arith.addf %10, %13 : vector<16x384xf32>
    %c0_13 = arith.constant 0 : index
    %c0_14 = arith.constant 0 : index
    %c0_15 = arith.constant 0 : index
    %15 = vector.load %arg7[%c0_13, %c0_14, %c0_15] : memref<1x16x384xf32, #tpu.memory_space<vmem>>, vector<1x16x384xf32>
    %16 = vector.shape_cast %15 : vector<1x16x384xf32> to vector<16x384xf32>
    %17 = vector.shape_cast %14 : vector<16x384xf32> to vector<1x16x384xf32>
    tpu.vector_store %arg7[%c0_13, %c0_14, %c0_15], %17 {strides = array<i32>} : memref<1x16x384xf32, #tpu.memory_space<vmem>>, vector<1x16x384xf32>,
    %18 = vector.extract_strided_slice %7 {offsets = [0, 1], sizes = [16, 384], strides = [1, 1]} : vector<16x512xbf16> to vector<16x384xbf16>
    %c0_16 = arith.constant 0 : index
    %c0_17 = arith.constant 0 : index
    %c0_18 = arith.constant 0 : index
    %19 = vector.load %arg7[%c0_16, %c0_17, %c0_18] : memref<1x16x384xf32, #tpu.memory_space<vmem>>, vector<1x16x384xf32>
    %20 = vector.shape_cast %19 : vector<1x16x384xf32> to vector<16x384xf32>
    %c0_19 = arith.constant 0 : index
    %c1 = arith.constant 1 : index
    %c0_20 = arith.constant 0 : index
    %c0_21 = arith.constant 0 : index
    %21 = vector.load %arg3[%c0_19, %c1, %c0_20, %c0_21] : memref<1x9x16x16xbf16, #tpu.memory_space<vmem>>, vector<1x1x16x16xbf16>
    %22 = vector.shape_cast %21 : vector<1x1x16x16xbf16> to vector<16x16xbf16>
    %cst_22 = arith.constant dense<0.000000e+00> : vector<16x384xf32>
    %23 = tpu.matmul %22, %18, %cst_22 {dimension_numbers = #tpu.dot_dimension_numbers<[1], [0], [0], [1], [0, 0, 1, 1], [], []>} : vector<16x16xbf16>, vector<16x384xbf16>, vector<16x384xf32> -> vector<16x384xf32>
    %24 = arith.addf %20, %23 : vector<16x384xf32>
    %c0_23 = arith.constant 0 : index
    %c0_24 = arith.constant 0 : index
    %c0_25 = arith.constant 0 : index
    %25 = vector.load %arg7[%c0_23, %c0_24, %c0_25] : memref<1x16x384xf32, #tpu.memory_space<vmem>>, vector<1x16x384xf32>
    %26 = vector.shape_cast %25 : vector<1x16x384xf32> to vector<16x384xf32>
    %27 = vector.shape_cast %24 : vector<16x384xf32> to vector<1x16x384xf32>
    tpu.vector_store %arg7[%c0_23, %c0_24, %c0_25], %27 {strides = array<i32>} : memref<1x16x384xf32, #tpu.memory_space<vmem>>, vector<1x16x384xf32>,
    %28 = vector.extract_strided_slice %7 {offsets = [0, 2], sizes = [16, 384], strides = [1, 1]} : vector<16x512xbf16> to vector<16x384xbf16>
    %c0_26 = arith.constant 0 : index
    %c0_27 = arith.constant 0 : index
    %c0_28 = arith.constant 0 : index
    %29 = vector.load %arg7[%c0_26, %c0_27, %c0_28] : memref<1x16x384xf32, #tpu.memory_space<vmem>>, vector<1x16x384xf32>
    %30 = vector.shape_cast %29 : vector<1x16x384xf32> to vector<16x384xf32>
    %c0_29 = arith.constant 0 : index
    %c2 = arith.constant 2 : index
    %c0_30 = arith.constant 0 : index
    %c0_31 = arith.constant 0 : index
    %31 = vector.load %arg3[%c0_29, %c2, %c0_30, %c0_31] : memref<1x9x16x16xbf16, #tpu.memory_space<vmem>>, vector<1x1x16x16xbf16>
    %32 = vector.shape_cast %31 : vector<1x1x16x16xbf16> to vector<16x16xbf16>
    %cst_32 = arith.constant dense<0.000000e+00> : vector<16x384xf32>
    %33 = tpu.matmul %32, %28, %cst_32 {dimension_numbers = #tpu.dot_dimension_numbers<[1], [0], [0], [1], [0, 0, 1, 1], [], []>} : vector<16x16xbf16>, vector<16x384xbf16>, vector<16x384xf32> -> vector<16x384xf32>
    %34 = arith.addf %30, %33 : vector<16x384xf32>
    %c0_33 = arith.constant 0 : index
    %c0_34 = arith.constant 0 : index
    %c0_35 = arith.constant 0 : index
    %35 = vector.load %arg7[%c0_33, %c0_34, %c0_35] : memref<1x16x384xf32, #tpu.memory_space<vmem>>, vector<1x16x384xf32>
    %36 = vector.shape_cast %35 : vector<1x16x384xf32> to vector<16x384xf32>
    %37 = vector.shape_cast %34 : vector<16x384xf32> to vector<1x16x384xf32>
    tpu.vector_store %arg7[%c0_33, %c0_34, %c0_35], %37 {strides = array<i32>} : memref<1x16x384xf32, #tpu.memory_space<vmem>>, vector<1x16x384xf32>,
    %38 = vector.extract_strided_slice %7 {offsets = [0, 18], sizes = [16, 384], strides = [1, 1]} : vector<16x512xbf16> to vector<16x384xbf16>
    %c0_36 = arith.constant 0 : index
    %c0_37 = arith.constant 0 : index
    %c0_38 = arith.constant 0 : index
    %39 = vector.load %arg7[%c0_36, %c0_37, %c0_38] : memref<1x16x384xf32, #tpu.memory_space<vmem>>, vector<1x16x384xf32>
    %40 = vector.shape_cast %39 : vector<1x16x384xf32> to vector<16x384xf32>
    %c0_39 = arith.constant 0 : index
    %c3 = arith.constant 3 : index
    %c0_40 = arith.constant 0 : index
    %c0_41 = arith.constant 0 : index
    %41 = vector.load %arg3[%c0_39, %c3, %c0_40, %c0_41] : memref<1x9x16x16xbf16, #tpu.memory_space<vmem>>, vector<1x1x16x16xbf16>
    %42 = vector.shape_cast %41 : vector<1x1x16x16xbf16> to vector<16x16xbf16>
    %cst_42 = arith.constant dense<0.000000e+00> : vector<16x384xf32>
    %43 = tpu.matmul %42, %38, %cst_42 {dimension_numbers = #tpu.dot_dimension_numbers<[1], [0], [0], [1], [0, 0, 1, 1], [], []>} : vector<16x16xbf16>, vector<16x384xbf16>, vector<16x384xf32> -> vector<16x384xf32>
    %44 = arith.addf %40, %43 : vector<16x384xf32>
    %c0_43 = arith.constant 0 : index
    %c0_44 = arith.constant 0 : index
    %c0_45 = arith.constant 0 : index
    %45 = vector.load %arg7[%c0_43, %c0_44, %c0_45] : memref<1x16x384xf32, #tpu.memory_space<vmem>>, vector<1x16x384xf32>
    %46 = vector.shape_cast %45 : vector<1x16x384xf32> to vector<16x384xf32>
    %47 = vector.shape_cast %44 : vector<16x384xf32> to vector<1x16x384xf32>
    tpu.vector_store %arg7[%c0_43, %c0_44, %c0_45], %47 {strides = array<i32>} : memref<1x16x384xf32, #tpu.memory_space<vmem>>, vector<1x16x384xf32>,
    %48 = vector.extract_strided_slice %7 {offsets = [0, 19], sizes = [16, 384], strides = [1, 1]} : vector<16x512xbf16> to vector<16x384xbf16>
    %c0_46 = arith.constant 0 : index
    %c0_47 = arith.constant 0 : index
    %c0_48 = arith.constant 0 : index
    %49 = vector.load %arg7[%c0_46, %c0_47, %c0_48] : memref<1x16x384xf32, #tpu.memory_space<vmem>>, vector<1x16x384xf32>
    %50 = vector.shape_cast %49 : vector<1x16x384xf32> to vector<16x384xf32>
    %c0_49 = arith.constant 0 : index
    %c4 = arith.constant 4 : index
    %c0_50 = arith.constant 0 : index
    %c0_51 = arith.constant 0 : index
    %51 = vector.load %arg3[%c0_49, %c4, %c0_50, %c0_51] : memref<1x9x16x16xbf16, #tpu.memory_space<vmem>>, vector<1x1x16x16xbf16>
    %52 = vector.shape_cast %51 : vector<1x1x16x16xbf16> to vector<16x16xbf16>
    %cst_52 = arith.constant dense<0.000000e+00> : vector<16x384xf32>
    %53 = tpu.matmul %52, %48, %cst_52 {dimension_numbers = #tpu.dot_dimension_numbers<[1], [0], [0], [1], [0, 0, 1, 1], [], []>} : vector<16x16xbf16>, vector<16x384xbf16>, vector<16x384xf32> -> vector<16x384xf32>
    %54 = arith.addf %50, %53 : vector<16x384xf32>
    %c0_53 = arith.constant 0 : index
    %c0_54 = arith.constant 0 : index
    %c0_55 = arith.constant 0 : index
    %55 = vector.load %arg7[%c0_53, %c0_54, %c0_55] : memref<1x16x384xf32, #tpu.memory_space<vmem>>, vector<1x16x384xf32>
    %56 = vector.shape_cast %55 : vector<1x16x384xf32> to vector<16x384xf32>
    %57 = vector.shape_cast %54 : vector<16x384xf32> to vector<1x16x384xf32>
    tpu.vector_store %arg7[%c0_53, %c0_54, %c0_55], %57 {strides = array<i32>} : memref<1x16x384xf32, #tpu.memory_space<vmem>>, vector<1x16x384xf32>,
    %58 = vector.extract_strided_slice %7 {offsets = [0, 20], sizes = [16, 384], strides = [1, 1]} : vector<16x512xbf16> to vector<16x384xbf16>
    %c0_56 = arith.constant 0 : index
    %c0_57 = arith.constant 0 : index
    %c0_58 = arith.constant 0 : index
    %59 = vector.load %arg7[%c0_56, %c0_57, %c0_58] : memref<1x16x384xf32, #tpu.memory_space<vmem>>, vector<1x16x384xf32>
    %60 = vector.shape_cast %59 : vector<1x16x384xf32> to vector<16x384xf32>
    %c0_59 = arith.constant 0 : index
    %c5 = arith.constant 5 : index
    %c0_60 = arith.constant 0 : index
    %c0_61 = arith.constant 0 : index
    %61 = vector.load %arg3[%c0_59, %c5, %c0_60, %c0_61] : memref<1x9x16x16xbf16, #tpu.memory_space<vmem>>, vector<1x1x16x16xbf16>
    %62 = vector.shape_cast %61 : vector<1x1x16x16xbf16> to vector<16x16xbf16>
    %cst_62 = arith.constant dense<0.000000e+00> : vector<16x384xf32>
    %63 = tpu.matmul %62, %58, %cst_62 {dimension_numbers = #tpu.dot_dimension_numbers<[1], [0], [0], [1], [0, 0, 1, 1], [], []>} : vector<16x16xbf16>, vector<16x384xbf16>, vector<16x384xf32> -> vector<16x384xf32>
    %64 = arith.addf %60, %63 : vector<16x384xf32>
    %c0_63 = arith.constant 0 : index
    %c0_64 = arith.constant 0 : index
    %c0_65 = arith.constant 0 : index
    %65 = vector.load %arg7[%c0_63, %c0_64, %c0_65] : memref<1x16x384xf32, #tpu.memory_space<vmem>>, vector<1x16x384xf32>
    %66 = vector.shape_cast %65 : vector<1x16x384xf32> to vector<16x384xf32>
    %67 = vector.shape_cast %64 : vector<16x384xf32> to vector<1x16x384xf32>
    tpu.vector_store %arg7[%c0_63, %c0_64, %c0_65], %67 {strides = array<i32>} : memref<1x16x384xf32, #tpu.memory_space<vmem>>, vector<1x16x384xf32>,
    %68 = vector.extract_strided_slice %7 {offsets = [0, 36], sizes = [16, 384], strides = [1, 1]} : vector<16x512xbf16> to vector<16x384xbf16>
    %c0_66 = arith.constant 0 : index
    %c0_67 = arith.constant 0 : index
    %c0_68 = arith.constant 0 : index
    %69 = vector.load %arg7[%c0_66, %c0_67, %c0_68] : memref<1x16x384xf32, #tpu.memory_space<vmem>>, vector<1x16x384xf32>
    %70 = vector.shape_cast %69 : vector<1x16x384xf32> to vector<16x384xf32>
    %c0_69 = arith.constant 0 : index
    %c6 = arith.constant 6 : index
    %c0_70 = arith.constant 0 : index
    %c0_71 = arith.constant 0 : index
    %71 = vector.load %arg3[%c0_69, %c6, %c0_70, %c0_71] : memref<1x9x16x16xbf16, #tpu.memory_space<vmem>>, vector<1x1x16x16xbf16>
    %72 = vector.shape_cast %71 : vector<1x1x16x16xbf16> to vector<16x16xbf16>
    %cst_72 = arith.constant dense<0.000000e+00> : vector<16x384xf32>
    %73 = tpu.matmul %72, %68, %cst_72 {dimension_numbers = #tpu.dot_dimension_numbers<[1], [0], [0], [1], [0, 0, 1, 1], [], []>} : vector<16x16xbf16>, vector<16x384xbf16>, vector<16x384xf32> -> vector<16x384xf32>
    %74 = arith.addf %70, %73 : vector<16x384xf32>
    %c0_73 = arith.constant 0 : index
    %c0_74 = arith.constant 0 : index
    %c0_75 = arith.constant 0 : index
    %75 = vector.load %arg7[%c0_73, %c0_74, %c0_75] : memref<1x16x384xf32, #tpu.memory_space<vmem>>, vector<1x16x384xf32>
    %76 = vector.shape_cast %75 : vector<1x16x384xf32> to vector<16x384xf32>
    %77 = vector.shape_cast %74 : vector<16x384xf32> to vector<1x16x384xf32>
    tpu.vector_store %arg7[%c0_73, %c0_74, %c0_75], %77 {strides = array<i32>} : memref<1x16x384xf32, #tpu.memory_space<vmem>>, vector<1x16x384xf32>,
    %78 = vector.extract_strided_slice %7 {offsets = [0, 37], sizes = [16, 384], strides = [1, 1]} : vector<16x512xbf16> to vector<16x384xbf16>
    %c0_76 = arith.constant 0 : index
    %c0_77 = arith.constant 0 : index
    %c0_78 = arith.constant 0 : index
    %79 = vector.load %arg7[%c0_76, %c0_77, %c0_78] : memref<1x16x384xf32, #tpu.memory_space<vmem>>, vector<1x16x384xf32>
    %80 = vector.shape_cast %79 : vector<1x16x384xf32> to vector<16x384xf32>
    %c0_79 = arith.constant 0 : index
    %c7 = arith.constant 7 : index
    %c0_80 = arith.constant 0 : index
    %c0_81 = arith.constant 0 : index
    %81 = vector.load %arg3[%c0_79, %c7, %c0_80, %c0_81] : memref<1x9x16x16xbf16, #tpu.memory_space<vmem>>, vector<1x1x16x16xbf16>
    %82 = vector.shape_cast %81 : vector<1x1x16x16xbf16> to vector<16x16xbf16>
    %cst_82 = arith.constant dense<0.000000e+00> : vector<16x384xf32>
    %83 = tpu.matmul %82, %78, %cst_82 {dimension_numbers = #tpu.dot_dimension_numbers<[1], [0], [0], [1], [0, 0, 1, 1], [], []>} : vector<16x16xbf16>, vector<16x384xbf16>, vector<16x384xf32> -> vector<16x384xf32>
    %84 = arith.addf %80, %83 : vector<16x384xf32>
    %c0_83 = arith.constant 0 : index
    %c0_84 = arith.constant 0 : index
    %c0_85 = arith.constant 0 : index
    %85 = vector.load %arg7[%c0_83, %c0_84, %c0_85] : memref<1x16x384xf32, #tpu.memory_space<vmem>>, vector<1x16x384xf32>
    %86 = vector.shape_cast %85 : vector<1x16x384xf32> to vector<16x384xf32>
    %87 = vector.shape_cast %84 : vector<16x384xf32> to vector<1x16x384xf32>
    tpu.vector_store %arg7[%c0_83, %c0_84, %c0_85], %87 {strides = array<i32>} : memref<1x16x384xf32, #tpu.memory_space<vmem>>, vector<1x16x384xf32>,
    %88 = vector.extract_strided_slice %7 {offsets = [0, 38], sizes = [16, 384], strides = [1, 1]} : vector<16x512xbf16> to vector<16x384xbf16>
    %c0_86 = arith.constant 0 : index
    %c0_87 = arith.constant 0 : index
    %c0_88 = arith.constant 0 : index
    %89 = vector.load %arg7[%c0_86, %c0_87, %c0_88] : memref<1x16x384xf32, #tpu.memory_space<vmem>>, vector<1x16x384xf32>
    %90 = vector.shape_cast %89 : vector<1x16x384xf32> to vector<16x384xf32>
    %c0_89 = arith.constant 0 : index
    %c8 = arith.constant 8 : index
    %c0_90 = arith.constant 0 : index
    %c0_91 = arith.constant 0 : index
    %91 = vector.load %arg3[%c0_89, %c8, %c0_90, %c0_91] : memref<1x9x16x16xbf16, #tpu.memory_space<vmem>>, vector<1x1x16x16xbf16>
    %92 = vector.shape_cast %91 : vector<1x1x16x16xbf16> to vector<16x16xbf16>
    %cst_92 = arith.constant dense<0.000000e+00> : vector<16x384xf32>
    %93 = tpu.matmul %92, %88, %cst_92 {dimension_numbers = #tpu.dot_dimension_numbers<[1], [0], [0], [1], [0, 0, 1, 1], [], []>} : vector<16x16xbf16>, vector<16x384xbf16>, vector<16x384xf32> -> vector<16x384xf32>
    %94 = arith.addf %90, %93 : vector<16x384xf32>
    %c0_93 = arith.constant 0 : index
    %c0_94 = arith.constant 0 : index
    %c0_95 = arith.constant 0 : index
    %95 = vector.load %arg7[%c0_93, %c0_94, %c0_95] : memref<1x16x384xf32, #tpu.memory_space<vmem>>, vector<1x16x384xf32>
    %96 = vector.shape_cast %95 : vector<1x16x384xf32> to vector<16x384xf32>
    %97 = vector.shape_cast %94 : vector<16x384xf32> to vector<1x16x384xf32>
    tpu.vector_store %arg7[%c0_93, %c0_94, %c0_95], %97 {strides = array<i32>} : memref<1x16x384xf32, #tpu.memory_space<vmem>>, vector<1x16x384xf32>,
    %c0_i32_96 = arith.constant 0 : i32
    %98 = arith.cmpi eq, %arg2, %c0_i32_96 : i32
    %99 = arith.extui %98 : i1 to i32
    %c0_i32_97 = arith.constant 0 : i32
    %100 = arith.cmpi ne, %99, %c0_i32_97 : i32
    scf.if %100 {
      %c0_98 = arith.constant 0 : index
      %c0_99 = arith.constant 0 : index
      %c0_100 = arith.constant 0 : index
      %101 = vector.load %arg7[%c0_98, %c0_99, %c0_100] : memref<1x16x384xf32, #tpu.memory_space<vmem>>, vector<1x16x384xf32>
      %102 = vector.shape_cast %101 : vector<1x16x384xf32> to vector<16x384xf32>
      %c0_101 = arith.constant 0 : index
      %c0_102 = arith.constant 0 : index
      %103 = vector.load %arg6[%c0_101, %c0_102] : memref<16x1xf32, #tpu.memory_space<vmem>>, vector<16x1xf32>
      %104 = vector.broadcast %103 : vector<16x1xf32> to vector<16x384xf32>
      %105 = arith.addf %102, %104 : vector<16x384xf32>
      %cst_103 = arith.constant 0.000000e+00 : f32
      %106 = vector.broadcast %cst_103 : f32 to vector<16x384xf32>
      %107 = arith.maximumf %105, %106 : vector<16x384xf32>
      %cst_104 = arith.constant 6.000000e+00 : f32
      %108 = vector.broadcast %cst_104 : f32 to vector<16x384xf32>
      %109 = arith.minimumf %107, %108 : vector<16x384xf32>
      %c0_105 = arith.constant 0 : index
      %c0_106 = arith.constant 0 : index
      %c0_107 = arith.constant 0 : index
      %110 = vector.load %arg7[%c0_105, %c0_106, %c0_107] : memref<1x16x384xf32, #tpu.memory_space<vmem>>, vector<1x16x384xf32>
      %111 = vector.shape_cast %110 : vector<1x16x384xf32> to vector<16x384xf32>
      %112 = vector.shape_cast %109 : vector<16x384xf32> to vector<1x16x384xf32>
      tpu.vector_store %arg7[%c0_105, %c0_106, %c0_107], %112 {strides = array<i32>} : memref<1x16x384xf32, #tpu.memory_space<vmem>>, vector<1x16x384xf32>,
    } else {
    }
    return
  }
  func.func @transform_0(%arg0: i32, %arg1: i32, %arg2: i32) -> (i32, i32, i32, i32) {
    %c0_i32 = arith.constant 0 : i32
    %c0_i32_0 = arith.constant 0 : i32
    %c0_i32_1 = arith.constant 0 : i32
    return %arg0, %c0_i32, %c0_i32_0, %arg2 : i32, i32, i32, i32
  }
  func.func @transform_1(%arg0: i32, %arg1: i32, %arg2: i32) -> (i32, i32, i32) {
    %c0_i32 = arith.constant 0 : i32
    return %arg0, %arg2, %arg1 : i32, i32, i32
  }
  func.func @transform_2(%arg0: i32, %arg1: i32, %arg2: i32) -> (i32, i32, i32) {
    %c1_i32 = arith.constant 1 : i32
    %0 = arith.addi %arg1, %c1_i32 : i32
    %c3_i32 = arith.constant 3 : i32
    %1 = arith.muli %0, %c3_i32 : i32
    %c0_i32 = arith.constant 0 : i32
    return %arg0, %arg2, %1 : i32, i32, i32
  }
  func.func @transform_3(%arg0: i32, %arg1: i32, %arg2: i32) -> (i32, i32) {
    %c0_i32 = arith.constant 0 : i32
    %c0_i32_0 = arith.constant 0 : i32
    %c0_i32_1 = arith.constant 0 : i32
    return %c0_i32, %c0_i32_0 : i32, i32
  }
  func.func @transform_4(%arg0: i32, %arg1: i32, %arg2: i32) -> (i32, i32, i32) {
    %c0_i32 = arith.constant 0 : i32
    %c0_i32_0 = arith.constant 0 : i32
    return %arg0, %c0_i32, %arg1 : i32, i32, i32
  }
}

</mosaic_0001>

<llo_original>
// kernel: cond_conv_bn_relu6.1
$region0: #{cond_conv_bn_relu6.1}
  #allocation0 [shape = 'u32[]', space=smem, size = 0x4, offset = 0x4, fixed_abs, tag = 'smem constant byte address 0x4 - core index']
  #allocation1 [shape = 'u32[72,128]{1,0:T(1,128)}', space=vmem, size = 0x9000, scoped, tag = 'internal scratch']
  %s0 = inlined_call_operand.vmem [shape: bf16[2,9,16,16], index: 0, kind: input, shape index: {}]
  %s1 = inlined_call_operand.vmem [shape: bf16[2,16,512], index: 1, kind: input, shape index: {}, may-alias: {1,2}]
  %s2 = inlined_call_operand.vmem [shape: bf16[2,16,512], index: 2, kind: input, shape index: {}, may-alias: {1,2}]
  %s3 = inlined_call_operand.vmem [shape: f32[16,1], index: 3, kind: input, shape index: {}]
  %s4 = inlined_call_operand.vmem [shape: f32[2,16,384], index: 4, kind: output, shape index: {}]
  %s5 = sld [smem:[#allocation0]]
  $region164: #{cond_conv_bn_relu6.1} parent=0
    _
  %s7 = ssub.s32 1, %s5
  %s8 = scalar_select 0, %s7, %s5
  $region1: #{cond_conv_bn_relu6.1} parent=0
    #allocation2 [shape = 'u8[24576]{0}', space=vmem, size = 0x6000, scoped, tag = 'input window, operand 1']
    #allocation3 [shape = 'u8[8192]{0}', space=vmem, size = 0x2000, scoped, tag = 'input window, operand 2']
    loop: start=0, step=1, limit=4
    $region2: #{cond_conv_bn_relu6.1} parent=1 // loop_pre_header
      _
    $region3: #{cond_conv_bn_relu6.1} parent=1 // loop_header
      %s10 = sphi 0, %s14
      %p11 = scmp.ge.s32.totalorder %s10, 4
      %s17 = sphi 0, %s36
      %s18 = sphi 0, %s32
      %s19 = sphi 0, %s28
      %s20 = sphi 0, %s17
      %s21 = sphi 0, %s18
      %s22 = sphi 0, %s19
      %s23 = sphi 0, %s20
      %s24 = sphi 0, %s21
      %s25 = sphi 0, %s22
      %s41 = sphi 0, %s43
      %s44 = sphi 0, %s41
      %s45 = sphi 0, %s44
      %s61 = sphi 0, %s45
      %s71 = sphi 0, %s73
      %s74 = sphi 0, %s71
      %s75 = sphi 0, %s74
      %s91 = sphi 0, %s75
      %s105 = sphi 0, %s107
      %s108 = sphi 0, %s105
      %s109 = sphi 0, %s108
      %s125 = sphi 0, %s109
      %s129 = sphi 0, %s129
      %s131 = sphi 0, %s129
      %s132 = sphi 0, %s131
      %s146 = sphi 0, %s132
      %s154 = sphi 0, %s156
      %s157 = sphi 0, %s154
      %s158 = sphi 0, %s157
      %s174 = sphi 0, %s158
    $region4: #{cond_conv_bn_relu6.1} parent=1 // loop_header_branch
      %13 = sbr.rel (%p11) target = $region8
    $region5: #{cond_conv_bn_relu6.1} parent=1 // loop_body
      %s15 = ssub.s32 %s10, 1
      %s16 = ssub.s32 %s10, 2
      %s26 = sadd.s32 1, %s19
      %p27 = scmp.ge.s32.totalorder %s26, 1
      %s28 = scalar_select %p27, 0, %s26
      %s29 = sadd.s32 1, %s18
      %s30 = scalar_select %p27, %s29, %s18
      %p31 = scmp.ge.s32.totalorder %s30, 1
      %s32 = scalar_select %p31, 0, %s30
      %s33 = sadd.s32 1, %s17
      %s34 = scalar_select %p31, %s33, %s17
      %p35 = scmp.ge.s32.totalorder %s34, 2
      %s36 = scalar_select %p35, 0, %s34
      %s37 = ssub.s32 %s17, %s36
      %s38 = ssub.s32 %s19, %s28
      %s39 = sor.u32 %s37, %s38
      %p40 = scmp.eq.s32.totalorder %s39, 0
      %s42 = sadd.s32 %s41, 1
      %s43 = scalar_select %p40, %s41, %s42
      %p46 = pneg %p40
      %p47 = scmp.eq.s32.totalorder %s10, 1
      %p48 = por %p46, %p47
      %p49 = scmp.ne.s32.totalorder %s41, %s44
      %p50 = scmp.eq.s32.totalorder %s10, 0
      %p51 = por %p49, %p50
      %p52 = scmp.ne.s32.totalorder %s41, %s44
      %p53 = scmp.eq.s32.totalorder %s15, 1
      %p54 = por %p52, %p53
      %p55 = scmp.ne.s32.totalorder %s44, %s45
      %p56 = scmp.eq.s32.totalorder %s15, 0
      %p57 = por %p55, %p56
      %p58 = scmp.ne.s32.totalorder %s44, %s45
      %p59 = scmp.eq.s32.totalorder %s16, 1
      %p60 = por %p58, %p59
      %p62 = scmp.ne.s32.totalorder %s45, %s61
      %p63 = scmp.eq.s32.totalorder %s16, 0
      %p64 = por %p62, %p63
      %s65 = ssub.s32 %s17, %s36
      %s66 = ssub.s32 %s19, %s28
      %s67 = sor.u32 %s65, %s66
      %s68 = ssub.s32 %s18, %s32
      %s69 = sor.u32 %s67, %s68
      %p70 = scmp.eq.s32.totalorder %s69, 0
      %s72 = sadd.s32 %s71, 1
      %s73 = scalar_select %p70, %s71, %s72
      %p76 = pneg %p70
      %p77 = scmp.eq.s32.totalorder %s10, 1
      %p78 = por %p76, %p77
      %p79 = scmp.ne.s32.totalorder %s71, %s74
      %p80 = scmp.eq.s32.totalorder %s10, 0
      %p81 = por %p79, %p80
      %p82 = scmp.ne.s32.totalorder %s71, %s74
      %p83 = scmp.eq.s32.totalorder %s15, 1
      %p84 = por %p82, %p83
      %p85 = scmp.ne.s32.totalorder %s74, %s75
      %p86 = scmp.eq.s32.totalorder %s15, 0
      %p87 = por %p85, %p86
      %p88 = scmp.ne.s32.totalorder %s74, %s75
      %p89 = scmp.eq.s32.totalorder %s16, 1
      %p90 = por %p88, %p89
      %p92 = scmp.ne.s32.totalorder %s75, %s91
      %p93 = scmp.eq.s32.totalorder %s16, 0
      %p94 = por %p92, %p93
      %s95 = sadd.s32 %s18, 1
      %s96 = smul.u32 %s95, 3
      %s97 = sadd.s32 %s32, 1
      %s98 = smul.u32 %s97, 3
      %s99 = ssub.s32 %s17, %s36
      %s100 = ssub.s32 %s19, %s28
      %s101 = sor.u32 %s99, %s100
      %s102 = ssub.s32 %s96, %s98
      %s103 = sor.u32 %s101, %s102
      %p104 = scmp.eq.s32.totalorder %s103, 0
      %s106 = sadd.s32 %s105, 1
      %s107 = scalar_select %p104, %s105, %s106
      %p110 = pneg %p104
      %p111 = scmp.eq.s32.totalorder %s10, 1
      %p112 = por %p110, %p111
      %p113 = scmp.ne.s32.totalorder %s105, %s108
      %p114 = scmp.eq.s32.totalorder %s10, 0
      %p115 = por %p113, %p114
      %p116 = scmp.ne.s32.totalorder %s105, %s108
      %p117 = scmp.eq.s32.totalorder %s15, 1
      %p118 = por %p116, %p117
      %p119 = scmp.ne.s32.totalorder %s108, %s109
      %p120 = scmp.eq.s32.totalorder %s15, 0
      %p121 = por %p119, %p120
      %p122 = scmp.ne.s32.totalorder %s108, %s109
      %p123 = scmp.eq.s32.totalorder %s16, 1
      %p124 = por %p122, %p123
      %p126 = scmp.ne.s32.totalorder %s109, %s125
      %p127 = scmp.eq.s32.totalorder %s16, 0
      %p128 = por %p126, %p127
      %s130 = sadd.s32 %s129, 1
      %p133 = scmp.eq.s32.totalorder %s10, 1
      %p134 = scmp.ne.s32.totalorder %s129, %s131
      %p135 = scmp.eq.s32.totalorder %s10, 0
      %p136 = por %p134, %p135
      %p137 = scmp.ne.s32.totalorder %s129, %s131
      %p138 = scmp.eq.s32.totalorder %s15, 1
      %p139 = por %p137, %p138
      %p140 = scmp.ne.s32.totalorder %s131, %s132
      %p141 = scmp.eq.s32.totalorder %s15, 0
      %p142 = por %p140, %p141
      %p143 = scmp.ne.s32.totalorder %s131, %s132
      %p144 = scmp.eq.s32.totalorder %s16, 1
      %p145 = por %p143, %p144
      %p147 = scmp.ne.s32.totalorder %s132, %s146
      %p148 = scmp.eq.s32.totalorder %s16, 0
      %p149 = por %p147, %p148
      %s150 = ssub.s32 %s17, %s36
      %s151 = ssub.s32 %s18, %s32
      %s152 = sor.u32 %s150, %s151
      %p153 = scmp.eq.s32.totalorder %s152, 0
      %s155 = sadd.s32 %s154, 1
      %s156 = scalar_select %p153, %s154, %s155
      %p159 = pneg %p153
      %p160 = scmp.eq.s32.totalorder %s10, 1
      %p161 = por %p159, %p160
      %p162 = scmp.ne.s32.totalorder %s154, %s157
      %p163 = scmp.eq.s32.totalorder %s10, 0
      %p164 = por %p162, %p163
      %p165 = scmp.ne.s32.totalorder %s154, %s157
      %p166 = scmp.eq.s32.totalorder %s15, 1
      %p167 = por %p165, %p166
      %p168 = scmp.ne.s32.totalorder %s157, %s158
      %p169 = scmp.eq.s32.totalorder %s15, 0
      %p170 = por %p168, %p169
      %p171 = scmp.ne.s32.totalorder %s157, %s158
      %p172 = scmp.eq.s32.totalorder %s16, 1
      %p173 = por %p171, %p172
      %p175 = scmp.ne.s32.totalorder %s158, %s174
      %p176 = scmp.eq.s32.totalorder %s16, 0
      %p177 = por %p175, %p176
      %p178 = scmp.le.s32.totalorder 1, %s10
      %p179 = scmp.lt.s32.totalorder %s10, 3
      %p180 = pnand %p178, %p179
      %p181 = pneg %p180
      // Predicated region
      $region9: #{cond_conv_bn_relu6.1} parent=5 // pred_check
        _
      $region10: #{cond_conv_bn_relu6.1} parent=5 // pred_check_branch
        %183 = sbr.rel (%p180) target = $region12
      $region11: #{cond_conv_bn_relu6.1} parent=5 // pred_region
        %s184 = ssub.s32 %s10, 1
        // Predicated region
        $region13: #{cond_conv_bn_relu6.1} parent=11 // pred_check
          %p185 = pneg %p142
        $region14: #{cond_conv_bn_relu6.1} parent=11 // pred_check_branch
          %187 = sbr.rel (%p185) target = $region16
        $region15: #{cond_conv_bn_relu6.1} parent=11 // pred_region
          _
        $region16: #{cond_conv_bn_relu6.1} parent=11 // pred_fallthru
          _
      $region12: #{cond_conv_bn_relu6.1} parent=5 // pred_fallthru
        _
      %p188 = scmp.lt.s32.totalorder %s10, 2
      // Predicated region
      $region17: #{cond_conv_bn_relu6.1} parent=5 // pred_check
        %p189 = pneg %p188
      $region18: #{cond_conv_bn_relu6.1} parent=5 // pred_check_branch
        %191 = sbr.rel (%p189) target = $region20
      $region19: #{cond_conv_bn_relu6.1} parent=5 // pred_region
        // Predicated region
        $region21: #{cond_conv_bn_relu6.1} parent=19 // pred_check
          %p192 = pneg %p51
        $region22: #{cond_conv_bn_relu6.1} parent=19 // pred_check_branch
          %194 = sbr.rel (%p192) target = $region24
        $region23: #{cond_conv_bn_relu6.1} parent=19 // pred_region
          %p195 = scmp.lt.s32.totalorder %s17, 1
          %s196 = scalar_select %p195, %s17, 1
          %p197 = scmp.lt.s32.totalorder %s19, 0
          %s198 = scalar_select %p197, %s19, 0
          %s199 = smul.addr %s196, 18
          %s200 = sadd.s32 %s198, %s199
          %s201 = smul.addr %s200, 4
          %s202 = scalar_lea.vmem %s0, %s201
        $region24: #{cond_conv_bn_relu6.1} parent=19 // pred_fallthru
          _
        // Predicated region
        $region25: #{cond_conv_bn_relu6.1} parent=19 // pred_check
          %p203 = pneg %p81
        $region26: #{cond_conv_bn_relu6.1} parent=19 // pred_check_branch
          %205 = sbr.rel (%p203) target = $region28
        $region27: #{cond_conv_bn_relu6.1} parent=19 // pred_region
          %s206 = sand.u32 %s71, 1
          %s207 = sand.u32 %s71, 1
          %s208 = smul.addr %s207, 24
          %s209 = scalar_lea.vmem [#allocation2], %s208
          %s210 = smul.u32 2, %s19
          %s211 = smul.u32 3, %s18
          %s212 = ssub.s32 4, %s211
          %p213 = scmp.lt.s32.totalorder %s212, 3
          %s214 = scalar_select %p213, %s212, 3
          %s215 = smul.u32 8, %s214
          %p216 = scmp.ne.s32.totalorder 0, %s215
          %s217 = smul.addr %s210, 4
          %s218 = sadd.s32 %s211, %s217
          %s219 = smul.addr %s17, 8
          %s220 = sadd.s32 %s218, %s219
          %s221 = smul.addr %s220, 4
          %s222 = scalar_lea.vmem %s1, %s221
          %s223 = smul.u32 %s214, 4
          // Predicated region
          $region29: #{cond_conv_bn_relu6.1} parent=27 // pred_check
            %p224 = pneg %p216
          $region30: #{cond_conv_bn_relu6.1} parent=27 // pred_check_branch
            %226 = sbr.rel (%p224) target = $region32
          $region31: #{cond_conv_bn_relu6.1} parent=27 // pred_region
            %p227 = scmp.lt.u32.totalorder %s223, 8
            %p228 = pneg %p227
            // Predicated region
            $region33: #{cond_conv_bn_relu6.1} parent=31 // pred_check
              _
            $region34: #{cond_conv_bn_relu6.1} parent=31 // pred_check_branch
              %230 = sbr.rel (%p227) target = $region36
            $region35: #{cond_conv_bn_relu6.1} parent=31 // pred_region
              %s248 = sand.u32 %s223, 7
              %p249 = scmp.eq.s32.totalorder %s248, 0
              // Predicated region
              $region48: #{cond_conv_bn_relu6.1} parent=35 // pred_check
                %p250 = pneg %p249
              $region49: #{cond_conv_bn_relu6.1} parent=35 // pred_check_branch
                %252 = sbr.rel (%p250) target = $region51
              $region50: #{cond_conv_bn_relu6.1} parent=35 // pred_region
                %s253 = sshrl.u32 %s223, 3
                %s254 = sshrl.u32 %s253, 4
                // While loop
                $region52: #{cond_conv_bn_relu6.1} parent=50 // loop_pre_header
                  _
                $region53: #{cond_conv_bn_relu6.1} parent=50 // loop_header
                  %s256 = sphi 0, %s258
                  %p257 = scmp.ge.s32.totalorder %s256, %s254
                  %s261 = sphi 0, %s330
                  %s262 = sphi %s222, %s333
                  %s263 = sphi %s209, %s334
                $region54: #{cond_conv_bn_relu6.1} parent=50 // loop_header_branch
                  %260 = sbr.rel (%p257) target = $region58
                $region55: #{cond_conv_bn_relu6.1} parent=50 // loop_body
                  %v264 = vld [vmem:[%s262] sm:$0xff]
                  %265 = vst [vmem:[%s263] sm:$0xff] %v264
                  %v266 = vld [vmem:[%s262 + $0x8] sm:$0xff]
                  %267 = vst [vmem:[%s263 + $0x8] sm:$0xff] %v266
                  %v268 = vld [vmem:[%s262 + $0x10] sm:$0xff]
                  %269 = vst [vmem:[%s263 + $0x10] sm:$0xff] %v268
                  %v270 = vld [vmem:[%s262 + $0x18] sm:$0xff]
                  %271 = vst [vmem:[%s263 + $0x18] sm:$0xff] %v270
                  %v272 = vld [vmem:[%s262 + $0x20] sm:$0xff]
                  %273 = vst [vmem:[%s263 + $0x20] sm:$0xff] %v272
                  %v274 = vld [vmem:[%s262 + $0x28] sm:$0xff]
                  %275 = vst [vmem:[%s263 + $0x28] sm:$0xff] %v274
                  %v276 = vld [vmem:[%s262 + $0x30] sm:$0xff]
                  %277 = vst [vmem:[%s263 + $0x30] sm:$0xff] %v276
                  %v278 = vld [vmem:[%s262 + $0x38] sm:$0xff]
                  %279 = vst [vmem:[%s263 + $0x38] sm:$0xff] %v278
                  %v280 = vld [vmem:[%s262 + $0x40] sm:$0xff]
                  %281 = vst [vmem:[%s263 + $0x40] sm:$0xff] %v280
                  %v282 = vld [vmem:[%s262 + $0x48] sm:$0xff]
                  %283 = vst [vmem:[%s263 + $0x48] sm:$0xff] %v282
                  %v284 = vld [vmem:[%s262 + $0x50] sm:$0xff]
                  %285 = vst [vmem:[%s263 + $0x50] sm:$0xff] %v284
                  %v286 = vld [vmem:[%s262 + $0x58] sm:$0xff]
                  %287 = vst [vmem:[%s263 + $0x58] sm:$0xff] %v286
                  %v288 = vld [vmem:[%s262 + $0x60] sm:$0xff]
                  %289 = vst [vmem:[%s263 + $0x60] sm:$0xff] %v288
                  %v290 = vld [vmem:[%s262 + $0x68] sm:$0xff]
                  %291 = vst [vmem:[%s263 + $0x68] sm:$0xff] %v290
                  %v292 = vld [vmem:[%s262 + $0x70] sm:$0xff]
                  %293 = vst [vmem:[%s263 + $0x70] sm:$0xff] %v292
                  %v294 = vld [vmem:[%s262 + $0x78] sm:$0xff]
                  %295 = vst [vmem:[%s263 + $0x78] sm:$0xff] %v294
                  %v296 = vld [vmem:[%s262 + $0x10] sm:$0xff]
                  %297 = vst [vmem:[%s263 + $0xc] sm:$0xff] %v296
                  %v298 = vld [vmem:[%s262 + $0x18] sm:$0xff]
                  %299 = vst [vmem:[%s263 + $0x14] sm:$0xff] %v298
                  %v300 = vld [vmem:[%s262 + $0x20] sm:$0xff]
                  %301 = vst [vmem:[%s263 + $0x1c] sm:$0xff] %v300
                  %v302 = vld [vmem:[%s262 + $0x28] sm:$0xff]
                  %303 = vst [vmem:[%s263 + $0x24] sm:$0xff] %v302
                  %v304 = vld [vmem:[%s262 + $0x30] sm:$0xff]
                  %305 = vst [vmem:[%s263 + $0x2c] sm:$0xff] %v304
                  %v306 = vld [vmem:[%s262 + $0x38] sm:$0xff]
                  %307 = vst [vmem:[%s263 + $0x34] sm:$0xff] %v306
                  %v308 = vld [vmem:[%s262 + $0x40] sm:$0xff]
                  %309 = vst [vmem:[%s263 + $0x3c] sm:$0xff] %v308
                  %v310 = vld [vmem:[%s262 + $0x48] sm:$0xff]
                  %311 = vst [vmem:[%s263 + $0x44] sm:$0xff] %v310
                  %v312 = vld [vmem:[%s262 + $0x50] sm:$0xff]
                  %313 = vst [vmem:[%s263 + $0x4c] sm:$0xff] %v312
                  %v314 = vld [vmem:[%s262 + $0x58] sm:$0xff]
                  %315 = vst [vmem:[%s263 + $0x54] sm:$0xff] %v314
                  %v316 = vld [vmem:[%s262 + $0x60] sm:$0xff]
                  %317 = vst [vmem:[%s263 + $0x5c] sm:$0xff] %v316
                  %v318 = vld [vmem:[%s262 + $0x68] sm:$0xff]
                  %319 = vst [vmem:[%s263 + $0x64] sm:$0xff] %v318
                  %v320 = vld [vmem:[%s262 + $0x70] sm:$0xff]
                  %321 = vst [vmem:[%s263 + $0x6c] sm:$0xff] %v320
                  %v322 = vld [vmem:[%s262 + $0x78] sm:$0xff]
                  %323 = vst [vmem:[%s263 + $0x74] sm:$0xff] %v322
                  %v324 = vld [vmem:[%s262 + $0x80] sm:$0xff]
                  %325 = vst [vmem:[%s263 + $0x7c] sm:$0xff] %v324
                  %v326 = vld [vmem:[%s262 + $0x88] sm:$0xff]
                  %327 = vst [vmem:[%s263 + $0x84] sm:$0xff] %v326
                  %s328 = sadd.s32 1, %s261
                  %p329 = scmp.ge.s32.totalorder %s328, %s254
                  %s330 = scalar_select %p329, 0, %s328
                  %s331 = smul.u32 %s330, 128
                  %s332 = smul.u32 %s330, 128
                  %s333 = scalar_lea.vmem %s222, %s331
                  %s334 = scalar_lea.vmem %s209, %s332 [#allocation2]
                $region56: #{cond_conv_bn_relu6.1} parent=50 // loop_footer
                  %s258 = sadd.s32 %s256, 1
                $region57: #{cond_conv_bn_relu6.1} parent=50 // loop_footer_branch
                  %255 = sbr.rel target = $region53
                $region58: #{cond_conv_bn_relu6.1} parent=50 // loop_exit
                  _
                %s335 = sshrl.u32 %s253, 4
                %s336 = sand.u32 %s253, 15
                %s337 = smul.u32 %s335, 16
                %s338 = smul.u32 8, %s337
                %s339 = scalar_lea.vmem %s222, %s338
                %s340 = smul.u32 8, %s337
                %s341 = scalar_lea.vmem %s209, %s340 [#allocation2]
                // While loop
                $region59: #{cond_conv_bn_relu6.1} parent=50 // loop_pre_header
                  _
                $region60: #{cond_conv_bn_relu6.1} parent=50 // loop_header
                  %s343 = sphi 0, %s345
                  %p344 = scmp.ge.s32.totalorder %s343, %s336
                  %s348 = sphi 0, %s357
                  %s349 = sphi %s339, %s360
                  %s350 = sphi %s341, %s361
                $region61: #{cond_conv_bn_relu6.1} parent=50 // loop_header_branch
                  %347 = sbr.rel (%p344) target = $region65
                $region62: #{cond_conv_bn_relu6.1} parent=50 // loop_body
                  %v351 = vld [vmem:[%s349] sm:$0xff]
                  %352 = vst [vmem:[%s350] sm:$0xff] %v351
                  %v353 = vld [vmem:[%s349 + $0x10] sm:$0xff]
                  %354 = vst [vmem:[%s350 + $0xc] sm:$0xff] %v353
                  %s355 = sadd.s32 1, %s348
                  %p356 = scmp.ge.s32.totalorder %s355, %s336
                  %s357 = scalar_select %p356, 0, %s355
                  %s358 = smul.u32 %s357, 8
                  %s359 = smul.u32 %s357, 8
                  %s360 = scalar_lea.vmem %s339, %s358
                  %s361 = scalar_lea.vmem %s341, %s359 [#allocation2]
                $region63: #{cond_conv_bn_relu6.1} parent=50 // loop_footer
                  %s345 = sadd.s32 %s343, 1
                $region64: #{cond_conv_bn_relu6.1} parent=50 // loop_footer_branch
                  %342 = sbr.rel target = $region60
                $region65: #{cond_conv_bn_relu6.1} parent=50 // loop_exit
                  _
              $region51: #{cond_conv_bn_relu6.1} parent=35 // pred_fallthru
                _
              %p362 = pneg %p249
              // Predicated region
              $region66: #{cond_conv_bn_relu6.1} parent=35 // pred_check
                _
              $region67: #{cond_conv_bn_relu6.1} parent=35 // pred_check_branch
                %364 = sbr.rel (%p249) target = $region69
              $region68: #{cond_conv_bn_relu6.1} parent=35 // pred_region
                %s365 = sand.u32 %s223, 7
                %s366 = ssub.s32 %s223, %s365
                %s367 = scalar_lea.vmem %s222, %s366
                %s368 = ssub.s32 %s223, %s365
                %s369 = scalar_lea.vmem %s209, %s368 [#allocation2]
                %s370 = sshrl.u32 %s223, 3
                %s371 = sshrl.u32 %s370, 4
                // While loop
                $region70: #{cond_conv_bn_relu6.1} parent=68 // loop_pre_header
                  _
                $region71: #{cond_conv_bn_relu6.1} parent=68 // loop_header
                  %s373 = sphi 0, %s375
                  %p374 = scmp.ge.s32.totalorder %s373, %s371
                  %s378 = sphi 0, %s447
                  %s379 = sphi %s222, %s450
                  %s380 = sphi %s209, %s451
                $region72: #{cond_conv_bn_relu6.1} parent=68 // loop_header_branch
                  %377 = sbr.rel (%p374) target = $region76
                $region73: #{cond_conv_bn_relu6.1} parent=68 // loop_body
                  %v381 = vld [vmem:[%s379] sm:$0xff]
                  %382 = vst [vmem:[%s380] sm:$0xff] %v381
                  %v383 = vld [vmem:[%s379 + $0x8] sm:$0xff]
                  %384 = vst [vmem:[%s380 + $0x8] sm:$0xff] %v383
                  %v385 = vld [vmem:[%s379 + $0x10] sm:$0xff]
                  %386 = vst [vmem:[%s380 + $0x10] sm:$0xff] %v385
                  %v387 = vld [vmem:[%s379 + $0x18] sm:$0xff]
                  %388 = vst [vmem:[%s380 + $0x18] sm:$0xff] %v387
                  %v389 = vld [vmem:[%s379 + $0x20] sm:$0xff]
                  %390 = vst [vmem:[%s380 + $0x20] sm:$0xff] %v389
                  %v391 = vld [vmem:[%s379 + $0x28] sm:$0xff]
                  %392 = vst [vmem:[%s380 + $0x28] sm:$0xff] %v391
                  %v393 = vld [vmem:[%s379 + $0x30] sm:$0xff]
                  %394 = vst [vmem:[%s380 + $0x30] sm:$0xff] %v393
                  %v395 = vld [vmem:[%s379 + $0x38] sm:$0xff]
                  %396 = vst [vmem:[%s380 + $0x38] sm:$0xff] %v395
                  %v397 = vld [vmem:[%s379 + $0x40] sm:$0xff]
                  %398 = vst [vmem:[%s380 + $0x40] sm:$0xff] %v397
                  %v399 = vld [vmem:[%s379 + $0x48] sm:$0xff]
                  %400 = vst [vmem:[%s380 + $0x48] sm:$0xff] %v399
                  %v401 = vld [vmem:[%s379 + $0x50] sm:$0xff]
                  %402 = vst [vmem:[%s380 + $0x50] sm:$0xff] %v401
                  %v403 = vld [vmem:[%s379 + $0x58] sm:$0xff]
                  %404 = vst [vmem:[%s380 + $0x58] sm:$0xff] %v403
                  %v405 = vld [vmem:[%s379 + $0x60] sm:$0xff]
                  %406 = vst [vmem:[%s380 + $0x60] sm:$0xff] %v405
                  %v407 = vld [vmem:[%s379 + $0x68] sm:$0xff]
                  %408 = vst [vmem:[%s380 + $0x68] sm:$0xff] %v407
                  %v409 = vld [vmem:[%s379 + $0x70] sm:$0xff]
                  %410 = vst [vmem:[%s380 + $0x70] sm:$0xff] %v409
                  %v411 = vld [vmem:[%s379 + $0x78] sm:$0xff]
                  %412 = vst [vmem:[%s380 + $0x78] sm:$0xff] %v411
                  %v413 = vld [vmem:[%s379 + $0x10] sm:$0xff]
                  %414 = vst [vmem:[%s380 + $0xc] sm:$0xff] %v413
                  %v415 = vld [vmem:[%s379 + $0x18] sm:$0xff]
                  %416 = vst [vmem:[%s380 + $0x14] sm:$0xff] %v415
                  %v417 = vld [vmem:[%s379 + $0x20] sm:$0xff]
                  %418 = vst [vmem:[%s380 + $0x1c] sm:$0xff] %v417
                  %v419 = vld [vmem:[%s379 + $0x28] sm:$0xff]
                  %420 = vst [vmem:[%s380 + $0x24] sm:$0xff] %v419
                  %v421 = vld [vmem:[%s379 + $0x30] sm:$0xff]
                  %422 = vst [vmem:[%s380 + $0x2c] sm:$0xff] %v421
                  %v423 = vld [vmem:[%s379 + $0x38] sm:$0xff]
                  %424 = vst [vmem:[%s380 + $0x34] sm:$0xff] %v423
                  %v425 = vld [vmem:[%s379 + $0x40] sm:$0xff]
                  %426 = vst [vmem:[%s380 + $0x3c] sm:$0xff] %v425
                  %v427 = vld [vmem:[%s379 + $0x48] sm:$0xff]
                  %428 = vst [vmem:[%s380 + $0x44] sm:$0xff] %v427
                  %v429 = vld [vmem:[%s379 + $0x50] sm:$0xff]
                  %430 = vst [vmem:[%s380 + $0x4c] sm:$0xff] %v429
                  %v431 = vld [vmem:[%s379 + $0x58] sm:$0xff]
                  %432 = vst [vmem:[%s380 + $0x54] sm:$0xff] %v431
                  %v433 = vld [vmem:[%s379 + $0x60] sm:$0xff]
                  %434 = vst [vmem:[%s380 + $0x5c] sm:$0xff] %v433
                  %v435 = vld [vmem:[%s379 + $0x68] sm:$0xff]
                  %436 = vst [vmem:[%s380 + $0x64] sm:$0xff] %v435
                  %v437 = vld [vmem:[%s379 + $0x70] sm:$0xff]
                  %438 = vst [vmem:[%s380 + $0x6c] sm:$0xff] %v437
                  %v439 = vld [vmem:[%s379 + $0x78] sm:$0xff]
                  %440 = vst [vmem:[%s380 + $0x74] sm:$0xff] %v439
                  %v441 = vld [vmem:[%s379 + $0x80] sm:$0xff]
                  %442 = vst [vmem:[%s380 + $0x7c] sm:$0xff] %v441
                  %v443 = vld [vmem:[%s379 + $0x88] sm:$0xff]
                  %444 = vst [vmem:[%s380 + $0x84] sm:$0xff] %v443
                  %s445 = sadd.s32 1, %s378
                  %p446 = scmp.ge.s32.totalorder %s445, %s371
                  %s447 = scalar_select %p446, 0, %s445
                  %s448 = smul.u32 %s447, 128
                  %s449 = smul.u32 %s447, 128
                  %s450 = scalar_lea.vmem %s222, %s448
                  %s451 = scalar_lea.vmem %s209, %s449 [#allocation2]
                $region74: #{cond_conv_bn_relu6.1} parent=68 // loop_footer
                  %s375 = sadd.s32 %s373, 1
                $region75: #{cond_conv_bn_relu6.1} parent=68 // loop_footer_branch
                  %372 = sbr.rel target = $region71
                $region76: #{cond_conv_bn_relu6.1} parent=68 // loop_exit
                  _
                %s452 = sshrl.u32 %s370, 4
                %s453 = sand.u32 %s370, 15
                %s454 = smul.u32 %s452, 16
                %s455 = smul.u32 8, %s454
                %s456 = scalar_lea.vmem %s222, %s455
                %s457 = smul.u32 8, %s454
                %s458 = scalar_lea.vmem %s209, %s457 [#allocation2]
                // While loop
                $region77: #{cond_conv_bn_relu6.1} parent=68 // loop_pre_header
                  _
                $region78: #{cond_conv_bn_relu6.1} parent=68 // loop_header
                  %s460 = sphi 0, %s462
                  %p461 = scmp.ge.s32.totalorder %s460, %s453
                  %s465 = sphi 0, %s474
                  %s466 = sphi %s456, %s477
                  %s467 = sphi %s458, %s478
                $region79: #{cond_conv_bn_relu6.1} parent=68 // loop_header_branch
                  %464 = sbr.rel (%p461) target = $region83
                $region80: #{cond_conv_bn_relu6.1} parent=68 // loop_body
                  %v468 = vld [vmem:[%s466] sm:$0xff]
                  %469 = vst [vmem:[%s467] sm:$0xff] %v468
                  %v470 = vld [vmem:[%s466 + $0x10] sm:$0xff]
                  %471 = vst [vmem:[%s467 + $0xc] sm:$0xff] %v470
                  %s472 = sadd.s32 1, %s465
                  %p473 = scmp.ge.s32.totalorder %s472, %s453
                  %s474 = scalar_select %p473, 0, %s472
                  %s475 = smul.u32 %s474, 8
                  %s476 = smul.u32 %s474, 8
                  %s477 = scalar_lea.vmem %s456, %s475
                  %s478 = scalar_lea.vmem %s458, %s476 [#allocation2]
                $region81: #{cond_conv_bn_relu6.1} parent=68 // loop_footer
                  %s462 = sadd.s32 %s460, 1
                $region82: #{cond_conv_bn_relu6.1} parent=68 // loop_footer_branch
                  %459 = sbr.rel target = $region78
                $region83: #{cond_conv_bn_relu6.1} parent=68 // loop_exit
                  _
                %s479 = sshll.u32 1, %s365
                %s480 = ssub.s32 %s479, 1
                loop: start=0, step=1, limit=1
                $region84: #{cond_conv_bn_relu6.1} parent=68 // loop_pre_header
                  _
                $region85: #{cond_conv_bn_relu6.1} parent=68 // loop_header
                  %s482 = sphi 0, %s486
                  %p483 = scmp.ge.s32.totalorder %s482, 1
                  %s487 = sphi %s367, %s367
                  %s488 = sphi %s369, %s369
                $region86: #{cond_conv_bn_relu6.1} parent=68 // loop_header_branch
                  %485 = sbr.rel (%p483) target = $region90
                $region87: #{cond_conv_bn_relu6.1} parent=68 // loop_body
                  %v489 = vld [vmem:[%s487] sm:%s480]
                  %490 = vst [vmem:[%s488] sm:%s480] %v489
                  %v491 = vld [vmem:[%s487 + $0x10] sm:%s480]
                  %492 = vst [vmem:[%s488 + $0xc] sm:%s480] %v491
                $region88: #{cond_conv_bn_relu6.1} parent=68 // loop_footer
                  %s486 = sadd.s32 1, %s482
                $region89: #{cond_conv_bn_relu6.1} parent=68 // loop_footer_branch
                  %481 = sbr.rel target = $region85
                $region90: #{cond_conv_bn_relu6.1} parent=68 // loop_exit
                  _
              $region69: #{cond_conv_bn_relu6.1} parent=35 // pred_fallthru
                _
            $region36: #{cond_conv_bn_relu6.1} parent=31 // pred_fallthru
              _
            // Predicated region
            $region37: #{cond_conv_bn_relu6.1} parent=31 // pred_check
              %p231 = pneg %p227
            $region38: #{cond_conv_bn_relu6.1} parent=31 // pred_check_branch
              %233 = sbr.rel (%p231) target = $region40
            $region39: #{cond_conv_bn_relu6.1} parent=31 // pred_region
              %s234 = sshll.u32 1, %s223
              %s235 = ssub.s32 %s234, 1
              loop: start=0, step=1, limit=1
              $region41: #{cond_conv_bn_relu6.1} parent=39 // loop_pre_header
                _
              $region42: #{cond_conv_bn_relu6.1} parent=39 // loop_header
                %s237 = sphi 0, %s241
                %p238 = scmp.ge.s32.totalorder %s237, 1
                %s242 = sphi %s222, %s222
                %s243 = sphi %s209, %s209
              $region43: #{cond_conv_bn_relu6.1} parent=39 // loop_header_branch
                %240 = sbr.rel (%p238) target = $region47
              $region44: #{cond_conv_bn_relu6.1} parent=39 // loop_body
                %v244 = vld [vmem:[%s242] sm:%s235]
                %245 = vst [vmem:[%s243] sm:%s235] %v244
                %v246 = vld [vmem:[%s242 + $0x10] sm:%s235]
                %247 = vst [vmem:[%s243 + $0xc] sm:%s235] %v246
              $region45: #{cond_conv_bn_relu6.1} parent=39 // loop_footer
                %s241 = sadd.s32 1, %s237
              $region46: #{cond_conv_bn_relu6.1} parent=39 // loop_footer_branch
                %236 = sbr.rel target = $region42
              $region47: #{cond_conv_bn_relu6.1} parent=39 // loop_exit
                _
            $region40: #{cond_conv_bn_relu6.1} parent=31 // pred_fallthru
              _
          $region32: #{cond_conv_bn_relu6.1} parent=27 // pred_fallthru
            _
          %493 = vnop
        $region28: #{cond_conv_bn_relu6.1} parent=19 // pred_fallthru
          _
        // Predicated region
        $region91: #{cond_conv_bn_relu6.1} parent=19 // pred_check
          %p494 = pneg %p115
        $region92: #{cond_conv_bn_relu6.1} parent=19 // pred_check_branch
          %496 = sbr.rel (%p494) target = $region94
        $region93: #{cond_conv_bn_relu6.1} parent=19 // pred_region
          %s497 = sand.u32 %s105, 1
          %s498 = sand.u32 %s105, 1
          %s499 = smul.addr %s498, 8
          %s500 = scalar_lea.vmem [#allocation3], %s499
          %s501 = sadd.s32 %s18, 1
          %s502 = smul.u32 %s501, 3
          %s503 = smul.u32 2, %s19
          %s504 = smul.addr %s503, 4
          %s505 = sadd.s32 %s502, %s504
          %s506 = smul.addr %s17, 8
          %s507 = sadd.s32 %s505, %s506
          %s508 = smul.addr %s507, 4
          %s509 = scalar_lea.vmem %s2, %s508
          // Predicated region
          $region95: #{cond_conv_bn_relu6.1} parent=93 // pred_check
            _
          $region96: #{cond_conv_bn_relu6.1} parent=93 // pred_check_branch
            %511 = sbr.rel (0) target = $region98
          $region97: #{cond_conv_bn_relu6.1} parent=93 // pred_region
            // Predicated region
            $region99: #{cond_conv_bn_relu6.1} parent=97 // pred_check
              _
            $region100: #{cond_conv_bn_relu6.1} parent=97 // pred_check_branch
              %513 = sbr.rel target = $region102
            $region101: #{cond_conv_bn_relu6.1} parent=97 // pred_region
              // Predicated region
              $region114: #{cond_conv_bn_relu6.1} parent=101 // pred_check
                _
              $region115: #{cond_conv_bn_relu6.1} parent=101 // pred_check_branch
                %531 = sbr.rel (0) target = $region117
              $region116: #{cond_conv_bn_relu6.1} parent=101 // pred_region
                loop: start=0, step=1, limit=1
                $region118: #{cond_conv_bn_relu6.1} parent=116 // loop_pre_header
                  _
                $region119: #{cond_conv_bn_relu6.1} parent=116 // loop_header
                  %s533 = sphi 0, %s537
                  %p534 = scmp.ge.s32.totalorder %s533, 1
                  %s538 = sphi %s509, %s509
                  %s539 = sphi %s500, %s500
                $region120: #{cond_conv_bn_relu6.1} parent=116 // loop_header_branch
                  %536 = sbr.rel (%p534) target = $region124
                $region121: #{cond_conv_bn_relu6.1} parent=116 // loop_body
                  _
                $region122: #{cond_conv_bn_relu6.1} parent=116 // loop_footer
                  %s537 = sadd.s32 1, %s533
                $region123: #{cond_conv_bn_relu6.1} parent=116 // loop_footer_branch
                  %532 = sbr.rel target = $region119
                $region124: #{cond_conv_bn_relu6.1} parent=116 // loop_exit
                  _
                %s541 = ssub.s32 16, 1
                loop: start=0, step=1, limit=1
                $region125: #{cond_conv_bn_relu6.1} parent=116 // loop_pre_header
                  _
                $region126: #{cond_conv_bn_relu6.1} parent=116 // loop_header
                  %s543 = sphi 0, %s547
                  %p544 = scmp.ge.s32.totalorder %s543, 1
                  %s548 = sphi %s509, %s509
                  %s549 = sphi %s500, %s500
                $region127: #{cond_conv_bn_relu6.1} parent=116 // loop_header_branch
                  %546 = sbr.rel (%p544) target = $region131
                $region128: #{cond_conv_bn_relu6.1} parent=116 // loop_body
                  %v550 = vld [vmem:[%s548] sm:%s541]
                  %551 = vst [vmem:[%s549] sm:%s541] %v550
                  %v552 = vld [vmem:[%s548 + $0x10] sm:%s541]
                  %553 = vst [vmem:[%s549 + $0x4] sm:%s541] %v552
                $region129: #{cond_conv_bn_relu6.1} parent=116 // loop_footer
                  %s547 = sadd.s32 1, %s543
                $region130: #{cond_conv_bn_relu6.1} parent=116 // loop_footer_branch
                  %542 = sbr.rel target = $region126
                $region131: #{cond_conv_bn_relu6.1} parent=116 // loop_exit
                  _
              $region117: #{cond_conv_bn_relu6.1} parent=101 // pred_fallthru
                _
            $region102: #{cond_conv_bn_relu6.1} parent=97 // pred_fallthru
              _
            // Predicated region
            $region103: #{cond_conv_bn_relu6.1} parent=97 // pred_check
              _
            $region104: #{cond_conv_bn_relu6.1} parent=97 // pred_check_branch
              %515 = sbr.rel (0) target = $region106
            $region105: #{cond_conv_bn_relu6.1} parent=97 // pred_region
              %s517 = ssub.s32 16, 1
              loop: start=0, step=1, limit=1
              $region107: #{cond_conv_bn_relu6.1} parent=105 // loop_pre_header
                _
              $region108: #{cond_conv_bn_relu6.1} parent=105 // loop_header
                %s519 = sphi 0, %s523
                %p520 = scmp.ge.s32.totalorder %s519, 1
                %s524 = sphi %s509, %s509
                %s525 = sphi %s500, %s500
              $region109: #{cond_conv_bn_relu6.1} parent=105 // loop_header_branch
                %522 = sbr.rel (%p520) target = $region113
              $region110: #{cond_conv_bn_relu6.1} parent=105 // loop_body
                %v526 = vld [vmem:[%s524] sm:%s517]
                %527 = vst [vmem:[%s525] sm:%s517] %v526
                %v528 = vld [vmem:[%s524 + $0x10] sm:%s517]
                %529 = vst [vmem:[%s525 + $0x4] sm:%s517] %v528
              $region111: #{cond_conv_bn_relu6.1} parent=105 // loop_footer
                %s523 = sadd.s32 1, %s519
              $region112: #{cond_conv_bn_relu6.1} parent=105 // loop_footer_branch
                %518 = sbr.rel target = $region108
              $region113: #{cond_conv_bn_relu6.1} parent=105 // loop_exit
                _
            $region106: #{cond_conv_bn_relu6.1} parent=97 // pred_fallthru
              _
          $region98: #{cond_conv_bn_relu6.1} parent=93 // pred_fallthru
            _
          %554 = vnop
        $region94: #{cond_conv_bn_relu6.1} parent=19 // pred_fallthru
          _
      $region20: #{cond_conv_bn_relu6.1} parent=5 // pred_fallthru
        _
      %p555 = scmp.le.s32.totalorder 1, %s10
      %p556 = scmp.lt.s32.totalorder %s10, 3
      %p557 = pnand %p555, %p556
      %p558 = pneg %p557
      // Predicated region
      $region132: #{cond_conv_bn_relu6.1} parent=5 // pred_check
        _
      $region133: #{cond_conv_bn_relu6.1} parent=5 // pred_check_branch
        %560 = sbr.rel (%p557) target = $region135
      $region134: #{cond_conv_bn_relu6.1} parent=5 // pred_region
        %s561 = ssub.s32 %s10, 1
        %s562 = sand.u32 %s74, 1
        %s563 = sand.u32 %s74, 1
        %s564 = smul.addr %s563, 24
        %s565 = scalar_lea.vmem [#allocation2], %s564
        // Predicated region
        $region136: #{cond_conv_bn_relu6.1} parent=134 // pred_check
          %p566 = pneg %p87
        $region137: #{cond_conv_bn_relu6.1} parent=134 // pred_check_branch
          %568 = sbr.rel (%p566) target = $region139
        $region138: #{cond_conv_bn_relu6.1} parent=134 // pred_region
          _
        $region139: #{cond_conv_bn_relu6.1} parent=134 // pred_fallthru
          _
        %s569 = sand.u32 %s108, 1
        %s570 = sand.u32 %s108, 1
        %s571 = smul.addr %s570, 8
        %s572 = scalar_lea.vmem [#allocation3], %s571
        // Predicated region
        $region140: #{cond_conv_bn_relu6.1} parent=134 // pred_check
          %p573 = pneg %p121
        $region141: #{cond_conv_bn_relu6.1} parent=134 // pred_check_branch
          %575 = sbr.rel (%p573) target = $region143
        $region142: #{cond_conv_bn_relu6.1} parent=134 // pred_region
          _
        $region143: #{cond_conv_bn_relu6.1} parent=134 // pred_fallthru
          _
        %p576 = scmp.lt.s32.totalorder %s20, 1
        %s577 = scalar_select %p576, %s20, 1
        %p578 = scmp.lt.s32.totalorder %s22, 0
        %s579 = scalar_select %p578, %s22, 0
        %s580 = smul.addr %s577, 18
        %s581 = sadd.s32 %s579, %s580
        %s582 = smul.addr %s581, 4
        %s583 = scalar_lea.vmem %s0, %s582
        %p584 = pneg %p57
        %p585 = pneg %p54
        %s586 = sand.u32 %s74, 1
        %s587 = sand.u32 %s74, 1
        %s588 = smul.addr %s587, 24
        %s589 = scalar_lea.vmem [#allocation2], %s588
        %p590 = pneg %p87
        %p591 = pneg %p84
        %s592 = sand.u32 %s108, 1
        %s593 = sand.u32 %s108, 1
        %s594 = smul.addr %s593, 8
        %s595 = scalar_lea.vmem [#allocation3], %s594
        %p596 = pneg %p121
        %p597 = pneg %p118
        %p598 = pneg %p142
        %p599 = pneg %p139
        %p600 = pneg %p170
        %p601 = pneg %p167
        %s602 = smul.u32 3, %s21
        %p603 = scmp.lt.s32.totalorder %s20, 1
        %s604 = scalar_select %p603, %s20, 1
        %p605 = scmp.lt.s32.totalorder %s602, 2
        %s606 = scalar_select %p605, %s602, 2
        %s607 = smul.addr %s604, 6
        %s608 = sadd.s32 %s606, %s607
        %s609 = smul.addr %s608, 8
        %s610 = scalar_lea.vmem %s4, %s609
        %p611 = scmp.lt.s32.totalorder %s20, 1
        %s612 = scalar_select %p611, %s20, 1
        %p613 = scmp.lt.s32.totalorder %s22, 0
        %s614 = scalar_select %p613, %s22, 0
        %s615 = smul.addr %s612, 18
        %s616 = sadd.s32 %s614, %s615
        %s617 = smul.addr %s616, 4
        %s618 = scalar_lea.vmem %s0, %s617
        %s619 = smul.u32 2, %s22
        %s620 = smul.u32 3, %s21
        %s621 = ssub.s32 4, %s620
        %p622 = scmp.lt.s32.totalorder %s621, 3
        %s623 = scalar_select %p622, %s621, 3
        %s624 = smul.u32 8, %s623
        %s625 = sadd.s32 %s21, 1
        %s626 = smul.u32 %s625, 3
        %s627 = smul.u32 2, %s22
        %s628 = smul.u32 3, %s21
        %p629 = scmp.lt.s32.totalorder %s20, 1
        %s630 = scalar_select %p629, %s20, 1
        %p631 = scmp.lt.s32.totalorder %s628, 2
        %s632 = scalar_select %p631, %s628, 2
        %s633 = smul.addr %s630, 6
        %s634 = sadd.s32 %s632, %s633
        %s635 = smul.addr %s634, 8
        %s636 = scalar_lea.vmem %s4, %s635
        %s637 = smul.u32 3, %s21
        %p639 = scmp.eq.s32.totalorder %s22, 0
        // Predicated region
        $region144: #{cond_conv_bn_relu6.1} parent=134 // pred_check
          %p640 = pneg %p639
        $region145: #{cond_conv_bn_relu6.1} parent=134 // pred_check_branch
          %642 = sbr.rel (%p640) target = $region147
        $region146: #{cond_conv_bn_relu6.1} parent=134 // pred_region
          %643 = vst [vmem:[%s636] sm:$0xff] 0.0
          %644 = vst [vmem:[%s636 + $0x8] sm:$0xff] 0.0
          %645 = vst [vmem:[%s636 + $0x10] sm:$0xff] 0.0
          %646 = vst [vmem:[%s636 + $0x18] sm:$0xff] 0.0
          %647 = vst [vmem:[%s636 + $0x20] sm:$0xff] 0.0
          %648 = vst [vmem:[%s636 + $0x28] sm:$0xff] 0.0
        $region147: #{cond_conv_bn_relu6.1} parent=134 // pred_fallthru
          _
        %v649 = vld [vmem:[%s565] sm:$0xff]
        %v650 = vld [vmem:[%s565 + $0x8] sm:$0xf]
        %v651 = vld [vmem:[%s565 + $0xc] sm:$0xff]
        %v652 = vld [vmem:[%s565 + $0x14] sm:$0xf]
        %v653 = vld [vmem:[%s572] sm:$0xf]
        %v654 = vld [vmem:[%s572 + $0x4] sm:$0xf]
        %v659 = vunpack.c.l.b16 %v649
        %v660 = vunpack.c.h.b16 %v649
        %v661 = vunpack.c.l.b16 %v650
        %v662 = vunpack.c.l.b16 %v651
        %v663 = vunpack.c.h.b16 %v651
        %v664 = vunpack.c.l.b16 %v652
        %v665 = vpack.c.b16 %v662, %v659
        %v666 = vpack.c.b16 %v663, %v660
        %v667 = vpack.c.b16 %v664, %v661
        %v673 = vunpack.c.l.b16 %v653
        %v674 = vunpack.c.l.b16 %v654
        %v675 = vpack.c.b16 %v674, %v673
        %v676 = vld [vmem:[%s636] sm:$0xff]
        %v677 = vld [vmem:[%s636 + $0x8] sm:$0xff]
        %v678 = vld [vmem:[%s636 + $0x10] sm:$0xff]
        %v679 = vld [vmem:[%s636 + $0x18] sm:$0xff]
        %v680 = vld [vmem:[%s636 + $0x20] sm:$0xff]
        %v681 = vld [vmem:[%s636 + $0x28] sm:$0xff]
        %v682 = vld [vmem:[%s618] sm:$0xf]
        %v683 = vld [vmem:[%s618 + $0x4] sm:$0xf]
        %v686 = vunpack.c.l.b16 %v682
        %v687 = vunpack.c.l.b16 %v683
        %v688 = vpack.c.b16 %v687, %v686
        %vm689 = vcmask 130048
        %v691 = vsel %vm689, %v688, 0
        %693 = vmatpush.bf16.msra.mxu0 0
        %694 = vmatpush.bf16.msra.mxu0 0
        %695 = vmatpush.bf16.msra.mxu0 0
        %696 = vmatpush.bf16.msra.mxu0 0
        %697 = vmatpush.bf16.msra.mxu0 0
        %698 = vmatpush.bf16.msra.mxu0 0
        %699 = vmatpush.bf16.msra.mxu0 0
        %700 = vmatpush.bf16.msra.mxu0 %v665
        %701 = vmatmul.bf16.gmra.mxu0 %v691
        %v702 = vpop.f32.mrf.mxu0
        %v703 = vadd.f32 0.0, %v702
        %v704 = vpop.f32.mrf.mxu0
        %v705 = vadd.f32 0.0, %v704
        %706 = vdwg.mxu0
        %707 = vmatpush.bf16.msra.mxu0 0
        %708 = vmatpush.bf16.msra.mxu0 0
        %709 = vmatpush.bf16.msra.mxu0 0
        %710 = vmatpush.bf16.msra.mxu0 0
        %711 = vmatpush.bf16.msra.mxu0 0
        %712 = vmatpush.bf16.msra.mxu0 0
        %713 = vmatpush.bf16.msra.mxu0 0
        %714 = vmatpush.bf16.msra.mxu0 %v666
        %715 = vmatmul.bf16.gmra.mxu0 %v691
        %v716 = vpop.f32.mrf.mxu0
        %v717 = vadd.f32 0.0, %v716
        %v718 = vpop.f32.mrf.mxu0
        %v719 = vadd.f32 0.0, %v718
        %720 = vdwg.mxu0
        %721 = vmatpush.bf16.msra.mxu0 0
        %722 = vmatpush.bf16.msra.mxu0 0
        %723 = vmatpush.bf16.msra.mxu0 0
        %724 = vmatpush.bf16.msra.mxu0 0
        %725 = vmatpush.bf16.msra.mxu0 0
        %726 = vmatpush.bf16.msra.mxu0 0
        %727 = vmatpush.bf16.msra.mxu0 0
        %728 = vmatpush.bf16.msra.mxu0 %v667
        %729 = vmatmul.bf16.gmra.mxu0 %v691
        %v730 = vpop.f32.mrf.mxu0
        %v731 = vadd.f32 0.0, %v730
        %v732 = vpop.f32.mrf.mxu0
        %v733 = vadd.f32 0.0, %v732
        %734 = vdwg.mxu0
        %v735 = vadd.f32 %v676, %v703
        %v736 = vadd.f32 %v677, %v717
        %v737 = vadd.f32 %v678, %v731
        %v738 = vadd.f32 %v679, %v705
        %v739 = vadd.f32 %v680, %v719
        %v740 = vadd.f32 %v681, %v733
        %741 = vst [vmem:[%s636] sm:$0xff] %v735
        %742 = vst [vmem:[%s636 + $0x8] sm:$0xff] %v736
        %743 = vst [vmem:[%s636 + $0x10] sm:$0xff] %v737
        %744 = vst [vmem:[%s636 + $0x18] sm:$0xff] %v738
        %745 = vst [vmem:[%s636 + $0x20] sm:$0xff] %v739
        %746 = vst [vmem:[%s636 + $0x28] sm:$0xff] %v740
        %v747 = vld [vmem:[%s636] sm:$0xff]
        %v748 = vld [vmem:[%s636 + $0x8] sm:$0xff]
        %v749 = vld [vmem:[%s636 + $0x10] sm:$0xff]
        %v750 = vld [vmem:[%s636 + $0x18] sm:$0xff]
        %v751 = vld [vmem:[%s636 + $0x20] sm:$0xff]
        %v752 = vld [vmem:[%s636 + $0x28] sm:$0xff]
        %s753 = scalar_lea.vmem %s618, 8
        %v754 = vld [vmem:[%s753] sm:$0xf]
        %v755 = vld [vmem:[%s753 + $0x4] sm:$0xf]
        %v758 = vunpack.c.l.b16 %v754
        %v759 = vunpack.c.l.b16 %v755
        %v760 = vpack.c.b16 %v759, %v758
        %761 = vrot.lane.b32.xlu0 %v665, 127
        %v762 = vpop.permute.xlu0 %761
        %763 = vrot.lane.b32.xlu0 %v666, 127
        %v764 = vpop.permute.xlu0 %763
        %765 = vrot.lane.b32.xlu0 %v667, 127
        %v766 = vpop.permute.xlu0 %765
        %767 = vrot.lane.b32.xlu0 %v675, 127
        %v768 = vpop.permute.xlu0 %767
        %vm769 = vcmask 1039360
        %v770 = vsel %vm769, %v762, %v764
        %v771 = vsel %vm769, %v764, %v766
        %v772 = vsel %vm769, %v766, %v768
        %v777 = vsel %vm689, %v760, 0
        %779 = vmatpush.bf16.msra.mxu0 0
        %780 = vmatpush.bf16.msra.mxu0 0
        %781 = vmatpush.bf16.msra.mxu0 0
        %782 = vmatpush.bf16.msra.mxu0 0
        %783 = vmatpush.bf16.msra.mxu0 0
        %784 = vmatpush.bf16.msra.mxu0 0
        %785 = vmatpush.bf16.msra.mxu0 0
        %786 = vmatpush.bf16.msra.mxu0 %v770
        %787 = vmatmul.bf16.gmra.mxu0 %v777
        %v788 = vpop.f32.mrf.mxu0
        %v789 = vadd.f32 0.0, %v788
        %v790 = vpop.f32.mrf.mxu0
        %v791 = vadd.f32 0.0, %v790
        %792 = vdwg.mxu0
        %793 = vmatpush.bf16.msra.mxu0 0
        %794 = vmatpush.bf16.msra.mxu0 0
        %795 = vmatpush.bf16.msra.mxu0 0
        %796 = vmatpush.bf16.msra.mxu0 0
        %797 = vmatpush.bf16.msra.mxu0 0
        %798 = vmatpush.bf16.msra.mxu0 0
        %799 = vmatpush.bf16.msra.mxu0 0
        %800 = vmatpush.bf16.msra.mxu0 %v771
        %801 = vmatmul.bf16.gmra.mxu0 %v777
        %v802 = vpop.f32.mrf.mxu0
        %v803 = vadd.f32 0.0, %v802
        %v804 = vpop.f32.mrf.mxu0
        %v805 = vadd.f32 0.0, %v804
        %806 = vdwg.mxu0
        %807 = vmatpush.bf16.msra.mxu0 0
        %808 = vmatpush.bf16.msra.mxu0 0
        %809 = vmatpush.bf16.msra.mxu0 0
        %810 = vmatpush.bf16.msra.mxu0 0
        %811 = vmatpush.bf16.msra.mxu0 0
        %812 = vmatpush.bf16.msra.mxu0 0
        %813 = vmatpush.bf16.msra.mxu0 0
        %814 = vmatpush.bf16.msra.mxu0 %v772
        %815 = vmatmul.bf16.gmra.mxu0 %v777
        %v816 = vpop.f32.mrf.mxu0
        %v817 = vadd.f32 0.0, %v816
        %v818 = vpop.f32.mrf.mxu0
        %v819 = vadd.f32 0.0, %v818
        %820 = vdwg.mxu0
        %v821 = vadd.f32 %v747, %v789
        %v822 = vadd.f32 %v748, %v803
        %v823 = vadd.f32 %v749, %v817
        %v824 = vadd.f32 %v750, %v791
        %v825 = vadd.f32 %v751, %v805
        %v826 = vadd.f32 %v752, %v819
        %827 = vst [vmem:[%s636] sm:$0xff] %v821
        %828 = vst [vmem:[%s636 + $0x8] sm:$0xff] %v822
        %829 = vst [vmem:[%s636 + $0x10] sm:$0xff] %v823
        %830 = vst [vmem:[%s636 + $0x18] sm:$0xff] %v824
        %831 = vst [vmem:[%s636 + $0x20] sm:$0xff] %v825
        %832 = vst [vmem:[%s636 + $0x28] sm:$0xff] %v826
        %v833 = vld [vmem:[%s636] sm:$0xff]
        %v834 = vld [vmem:[%s636 + $0x8] sm:$0xff]
        %v835 = vld [vmem:[%s636 + $0x10] sm:$0xff]
        %v836 = vld [vmem:[%s636 + $0x18] sm:$0xff]
        %v837 = vld [vmem:[%s636 + $0x20] sm:$0xff]
        %v838 = vld [vmem:[%s636 + $0x28] sm:$0xff]
        %s839 = scalar_lea.vmem %s618, 16
        %v840 = vld [vmem:[%s839] sm:$0xf]
        %v841 = vld [vmem:[%s839 + $0x4] sm:$0xf]
        %v844 = vunpack.c.l.b16 %v840
        %v845 = vunpack.c.l.b16 %v841
        %v846 = vpack.c.b16 %v845, %v844
        %847 = vrot.lane.b32.xlu0 %v665, 126
        %v848 = vpop.permute.xlu0 %847
        %849 = vrot.lane.b32.xlu0 %v666, 126
        %v850 = vpop.permute.xlu0 %849
        %851 = vrot.lane.b32.xlu0 %v667, 126
        %v852 = vpop.permute.xlu0 %851
        %853 = vrot.lane.b32.xlu0 %v675, 126
        %v854 = vpop.permute.xlu0 %853
        %vm855 = vcmask 1031168
        %v856 = vsel %vm855, %v848, %v850
        %v857 = vsel %vm855, %v850, %v852
        %v858 = vsel %vm855, %v852, %v854
        %v863 = vsel %vm689, %v846, 0
        %865 = vmatpush.bf16.msra.mxu0 0
        %866 = vmatpush.bf16.msra.mxu0 0
        %867 = vmatpush.bf16.msra.mxu0 0
        %868 = vmatpush.bf16.msra.mxu0 0
        %869 = vmatpush.bf16.msra.mxu0 0
        %870 = vmatpush.bf16.msra.mxu0 0
        %871 = vmatpush.bf16.msra.mxu0 0
        %872 = vmatpush.bf16.msra.mxu0 %v856
        %873 = vmatmul.bf16.gmra.mxu0 %v863
        %v874 = vpop.f32.mrf.mxu0
        %v875 = vadd.f32 0.0, %v874
        %v876 = vpop.f32.mrf.mxu0
        %v877 = vadd.f32 0.0, %v876
        %878 = vdwg.mxu0
        %879 = vmatpush.bf16.msra.mxu0 0
        %880 = vmatpush.bf16.msra.mxu0 0
        %881 = vmatpush.bf16.msra.mxu0 0
        %882 = vmatpush.bf16.msra.mxu0 0
        %883 = vmatpush.bf16.msra.mxu0 0
        %884 = vmatpush.bf16.msra.mxu0 0
        %885 = vmatpush.bf16.msra.mxu0 0
        %886 = vmatpush.bf16.msra.mxu0 %v857
        %887 = vmatmul.bf16.gmra.mxu0 %v863
        %v888 = vpop.f32.mrf.mxu0
        %v889 = vadd.f32 0.0, %v888
        %v890 = vpop.f32.mrf.mxu0
        %v891 = vadd.f32 0.0, %v890
        %892 = vdwg.mxu0
        %893 = vmatpush.bf16.msra.mxu0 0
        %894 = vmatpush.bf16.msra.mxu0 0
        %895 = vmatpush.bf16.msra.mxu0 0
        %896 = vmatpush.bf16.msra.mxu0 0
        %897 = vmatpush.bf16.msra.mxu0 0
        %898 = vmatpush.bf16.msra.mxu0 0
        %899 = vmatpush.bf16.msra.mxu0 0
        %900 = vmatpush.bf16.msra.mxu0 %v858
        %901 = vmatmul.bf16.gmra.mxu0 %v863
        %v902 = vpop.f32.mrf.mxu0
        %v903 = vadd.f32 0.0, %v902
        %v904 = vpop.f32.mrf.mxu0
        %v905 = vadd.f32 0.0, %v904
        %906 = vdwg.mxu0
        %v907 = vadd.f32 %v833, %v875
        %v908 = vadd.f32 %v834, %v889
        %v909 = vadd.f32 %v835, %v903
        %v910 = vadd.f32 %v836, %v877
        %v911 = vadd.f32 %v837, %v891
        %v912 = vadd.f32 %v838, %v905
        %913 = vst [vmem:[%s636] sm:$0xff] %v907
        %914 = vst [vmem:[%s636 + $0x8] sm:$0xff] %v908
        %915 = vst [vmem:[%s636 + $0x10] sm:$0xff] %v909
        %916 = vst [vmem:[%s636 + $0x18] sm:$0xff] %v910
        %917 = vst [vmem:[%s636 + $0x20] sm:$0xff] %v911
        %918 = vst [vmem:[%s636 + $0x28] sm:$0xff] %v912
        %v919 = vld [vmem:[%s636] sm:$0xff]
        %v920 = vld [vmem:[%s636 + $0x8] sm:$0xff]
        %v921 = vld [vmem:[%s636 + $0x10] sm:$0xff]
        %v922 = vld [vmem:[%s636 + $0x18] sm:$0xff]
        %v923 = vld [vmem:[%s636 + $0x20] sm:$0xff]
        %v924 = vld [vmem:[%s636 + $0x28] sm:$0xff]
        %s925 = scalar_lea.vmem %s618, 24
        %v926 = vld [vmem:[%s925] sm:$0xf]
        %v927 = vld [vmem:[%s925 + $0x4] sm:$0xf]
        %v930 = vunpack.c.l.b16 %v926
        %v931 = vunpack.c.l.b16 %v927
        %v932 = vpack.c.b16 %v931, %v930
        %933 = vrot.lane.b32.xlu0 %v665, 110
        %v934 = vpop.permute.xlu0 %933
        %935 = vrot.lane.b32.xlu0 %v666, 110
        %v936 = vpop.permute.xlu0 %935
        %937 = vrot.lane.b32.xlu0 %v667, 110
        %v938 = vpop.permute.xlu0 %937
        %939 = vrot.lane.b32.xlu0 %v675, 110
        %v940 = vpop.permute.xlu0 %939
        %vm941 = vcmask 900096
        %v942 = vsel %vm941, %v934, %v936
        %v943 = vsel %vm941, %v936, %v938
        %v944 = vsel %vm941, %v938, %v940
        %v949 = vsel %vm689, %v932, 0
        %951 = vmatpush.bf16.msra.mxu0 0
        %952 = vmatpush.bf16.msra.mxu0 0
        %953 = vmatpush.bf16.msra.mxu0 0
        %954 = vmatpush.bf16.msra.mxu0 0
        %955 = vmatpush.bf16.msra.mxu0 0
        %956 = vmatpush.bf16.msra.mxu0 0
        %957 = vmatpush.bf16.msra.mxu0 0
        %958 = vmatpush.bf16.msra.mxu0 %v942
        %959 = vmatmul.bf16.gmra.mxu0 %v949
        %v960 = vpop.f32.mrf.mxu0
        %v961 = vadd.f32 0.0, %v960
        %v962 = vpop.f32.mrf.mxu0
        %v963 = vadd.f32 0.0, %v962
        %964 = vdwg.mxu0
        %965 = vmatpush.bf16.msra.mxu0 0
        %966 = vmatpush.bf16.msra.mxu0 0
        %967 = vmatpush.bf16.msra.mxu0 0
        %968 = vmatpush.bf16.msra.mxu0 0
        %969 = vmatpush.bf16.msra.mxu0 0
        %970 = vmatpush.bf16.msra.mxu0 0
        %971 = vmatpush.bf16.msra.mxu0 0
        %972 = vmatpush.bf16.msra.mxu0 %v943
        %973 = vmatmul.bf16.gmra.mxu0 %v949
        %v974 = vpop.f32.mrf.mxu0
        %v975 = vadd.f32 0.0, %v974
        %v976 = vpop.f32.mrf.mxu0
        %v977 = vadd.f32 0.0, %v976
        %978 = vdwg.mxu0
        %979 = vmatpush.bf16.msra.mxu0 0
        %980 = vmatpush.bf16.msra.mxu0 0
        %981 = vmatpush.bf16.msra.mxu0 0
        %982 = vmatpush.bf16.msra.mxu0 0
        %983 = vmatpush.bf16.msra.mxu0 0
        %984 = vmatpush.bf16.msra.mxu0 0
        %985 = vmatpush.bf16.msra.mxu0 0
        %986 = vmatpush.bf16.msra.mxu0 %v944
        %987 = vmatmul.bf16.gmra.mxu0 %v949
        %v988 = vpop.f32.mrf.mxu0
        %v989 = vadd.f32 0.0, %v988
        %v990 = vpop.f32.mrf.mxu0
        %v991 = vadd.f32 0.0, %v990
        %992 = vdwg.mxu0
        %v993 = vadd.f32 %v919, %v961
        %v994 = vadd.f32 %v920, %v975
        %v995 = vadd.f32 %v921, %v989
        %v996 = vadd.f32 %v922, %v963
        %v997 = vadd.f32 %v923, %v977
        %v998 = vadd.f32 %v924, %v991
        %999 = vst [vmem:[%s636] sm:$0xff] %v993
        %1000 = vst [vmem:[%s636 + $0x8] sm:$0xff] %v994
        %1001 = vst [vmem:[%s636 + $0x10] sm:$0xff] %v995
        %1002 = vst [vmem:[%s636 + $0x18] sm:$0xff] %v996
        %1003 = vst [vmem:[%s636 + $0x20] sm:$0xff] %v997
        %1004 = vst [vmem:[%s636 + $0x28] sm:$0xff] %v998
        %v1005 = vld [vmem:[%s636] sm:$0xff]
        %v1006 = vld [vmem:[%s636 + $0x8] sm:$0xff]
        %v1007 = vld [vmem:[%s636 + $0x10] sm:$0xff]
        %v1008 = vld [vmem:[%s636 + $0x18] sm:$0xff]
        %v1009 = vld [vmem:[%s636 + $0x20] sm:$0xff]
        %v1010 = vld [vmem:[%s636 + $0x28] sm:$0xff]
        %s1011 = scalar_lea.vmem %s618, 32
        %v1012 = vld [vmem:[%s1011] sm:$0xf]
        %v1013 = vld [vmem:[%s1011 + $0x4] sm:$0xf]
        %v1016 = vunpack.c.l.b16 %v1012
        %v1017 = vunpack.c.l.b16 %v1013
        %v1018 = vpack.c.b16 %v1017, %v1016
        %1019 = vrot.lane.b32.xlu0 %v665, 109
        %v1020 = vpop.permute.xlu0 %1019
        %1021 = vrot.lane.b32.xlu0 %v666, 109
        %v1022 = vpop.permute.xlu0 %1021
        %1023 = vrot.lane.b32.xlu0 %v667, 109
        %v1024 = vpop.permute.xlu0 %1023
        %1025 = vrot.lane.b32.xlu0 %v675, 109
        %v1026 = vpop.permute.xlu0 %1025
        %vm1027 = vcmask 891904
        %v1028 = vsel %vm1027, %v1020, %v1022
        %v1029 = vsel %vm1027, %v1022, %v1024
        %v1030 = vsel %vm1027, %v1024, %v1026
        %v1035 = vsel %vm689, %v1018, 0
        %1037 = vmatpush.bf16.msra.mxu0 0
        %1038 = vmatpush.bf16.msra.mxu0 0
        %1039 = vmatpush.bf16.msra.mxu0 0
        %1040 = vmatpush.bf16.msra.mxu0 0
        %1041 = vmatpush.bf16.msra.mxu0 0
        %1042 = vmatpush.bf16.msra.mxu0 0
        %1043 = vmatpush.bf16.msra.mxu0 0
        %1044 = vmatpush.bf16.msra.mxu0 %v1028
        %1045 = vmatmul.bf16.gmra.mxu0 %v1035
        %v1046 = vpop.f32.mrf.mxu0
        %v1047 = vadd.f32 0.0, %v1046
        %v1048 = vpop.f32.mrf.mxu0
        %v1049 = vadd.f32 0.0, %v1048
        %1050 = vdwg.mxu0
        %1051 = vmatpush.bf16.msra.mxu0 0
        %1052 = vmatpush.bf16.msra.mxu0 0
        %1053 = vmatpush.bf16.msra.mxu0 0
        %1054 = vmatpush.bf16.msra.mxu0 0
        %1055 = vmatpush.bf16.msra.mxu0 0
        %1056 = vmatpush.bf16.msra.mxu0 0
        %1057 = vmatpush.bf16.msra.mxu0 0
        %1058 = vmatpush.bf16.msra.mxu0 %v1029
        %1059 = vmatmul.bf16.gmra.mxu0 %v1035
        %v1060 = vpop.f32.mrf.mxu0
        %v1061 = vadd.f32 0.0, %v1060
        %v1062 = vpop.f32.mrf.mxu0
        %v1063 = vadd.f32 0.0, %v1062
        %1064 = vdwg.mxu0
        %1065 = vmatpush.bf16.msra.mxu0 0
        %1066 = vmatpush.bf16.msra.mxu0 0
        %1067 = vmatpush.bf16.msra.mxu0 0
        %1068 = vmatpush.bf16.msra.mxu0 0
        %1069 = vmatpush.bf16.msra.mxu0 0
        %1070 = vmatpush.bf16.msra.mxu0 0
        %1071 = vmatpush.bf16.msra.mxu0 0
        %1072 = vmatpush.bf16.msra.mxu0 %v1030
        %1073 = vmatmul.bf16.gmra.mxu0 %v1035
        %v1074 = vpop.f32.mrf.mxu0
        %v1075 = vadd.f32 0.0, %v1074
        %v1076 = vpop.f32.mrf.mxu0
        %v1077 = vadd.f32 0.0, %v1076
        %1078 = vdwg.mxu0
        %v1079 = vadd.f32 %v1005, %v1047
        %v1080 = vadd.f32 %v1006, %v1061
        %v1081 = vadd.f32 %v1007, %v1075
        %v1082 = vadd.f32 %v1008, %v1049
        %v1083 = vadd.f32 %v1009, %v1063
        %v1084 = vadd.f32 %v1010, %v1077
        %1085 = vst [vmem:[%s636] sm:$0xff] %v1079
        %1086 = vst [vmem:[%s636 + $0x8] sm:$0xff] %v1080
        %1087 = vst [vmem:[%s636 + $0x10] sm:$0xff] %v1081
        %1088 = vst [vmem:[%s636 + $0x18] sm:$0xff] %v1082
        %1089 = vst [vmem:[%s636 + $0x20] sm:$0xff] %v1083
        %1090 = vst [vmem:[%s636 + $0x28] sm:$0xff] %v1084
        %v1091 = vld [vmem:[%s636] sm:$0xff]
        %v1092 = vld [vmem:[%s636 + $0x8] sm:$0xff]
        %v1093 = vld [vmem:[%s636 + $0x10] sm:$0xff]
        %v1094 = vld [vmem:[%s636 + $0x18] sm:$0xff]
        %v1095 = vld [vmem:[%s636 + $0x20] sm:$0xff]
        %v1096 = vld [vmem:[%s636 + $0x28] sm:$0xff]
        %s1097 = scalar_lea.vmem %s618, 40
        %v1098 = vld [vmem:[%s1097] sm:$0xf]
        %v1099 = vld [vmem:[%s1097 + $0x4] sm:$0xf]
        %v1102 = vunpack.c.l.b16 %v1098
        %v1103 = vunpack.c.l.b16 %v1099
        %v1104 = vpack.c.b16 %v1103, %v1102
        %1105 = vrot.lane.b32.xlu0 %v665, 108
        %v1106 = vpop.permute.xlu0 %1105
        %1107 = vrot.lane.b32.xlu0 %v666, 108
        %v1108 = vpop.permute.xlu0 %1107
        %1109 = vrot.lane.b32.xlu0 %v667, 108
        %v1110 = vpop.permute.xlu0 %1109
        %1111 = vrot.lane.b32.xlu0 %v675, 108
        %v1112 = vpop.permute.xlu0 %1111
        %vm1113 = vcmask 883712
        %v1114 = vsel %vm1113, %v1106, %v1108
        %v1115 = vsel %vm1113, %v1108, %v1110
        %v1116 = vsel %vm1113, %v1110, %v1112
        %v1121 = vsel %vm689, %v1104, 0
        %1123 = vmatpush.bf16.msra.mxu0 0
        %1124 = vmatpush.bf16.msra.mxu0 0
        %1125 = vmatpush.bf16.msra.mxu0 0
        %1126 = vmatpush.bf16.msra.mxu0 0
        %1127 = vmatpush.bf16.msra.mxu0 0
        %1128 = vmatpush.bf16.msra.mxu0 0
        %1129 = vmatpush.bf16.msra.mxu0 0
        %1130 = vmatpush.bf16.msra.mxu0 %v1114
        %1131 = vmatmul.bf16.gmra.mxu0 %v1121
        %v1132 = vpop.f32.mrf.mxu0
        %v1133 = vadd.f32 0.0, %v1132
        %v1134 = vpop.f32.mrf.mxu0
        %v1135 = vadd.f32 0.0, %v1134
        %1136 = vdwg.mxu0
        %1137 = vmatpush.bf16.msra.mxu0 0
        %1138 = vmatpush.bf16.msra.mxu0 0
        %1139 = vmatpush.bf16.msra.mxu0 0
        %1140 = vmatpush.bf16.msra.mxu0 0
        %1141 = vmatpush.bf16.msra.mxu0 0
        %1142 = vmatpush.bf16.msra.mxu0 0
        %1143 = vmatpush.bf16.msra.mxu0 0
        %1144 = vmatpush.bf16.msra.mxu0 %v1115
        %1145 = vmatmul.bf16.gmra.mxu0 %v1121
        %v1146 = vpop.f32.mrf.mxu0
        %v1147 = vadd.f32 0.0, %v1146
        %v1148 = vpop.f32.mrf.mxu0
        %v1149 = vadd.f32 0.0, %v1148
        %1150 = vdwg.mxu0
        %1151 = vmatpush.bf16.msra.mxu0 0
        %1152 = vmatpush.bf16.msra.mxu0 0
        %1153 = vmatpush.bf16.msra.mxu0 0
        %1154 = vmatpush.bf16.msra.mxu0 0
        %1155 = vmatpush.bf16.msra.mxu0 0
        %1156 = vmatpush.bf16.msra.mxu0 0
        %1157 = vmatpush.bf16.msra.mxu0 0
        %1158 = vmatpush.bf16.msra.mxu0 %v1116
        %1159 = vmatmul.bf16.gmra.mxu0 %v1121
        %v1160 = vpop.f32.mrf.mxu0
        %v1161 = vadd.f32 0.0, %v1160
        %v1162 = vpop.f32.mrf.mxu0
        %v1163 = vadd.f32 0.0, %v1162
        %1164 = vdwg.mxu0
        %v1165 = vadd.f32 %v1091, %v1133
        %v1166 = vadd.f32 %v1092, %v1147
        %v1167 = vadd.f32 %v1093, %v1161
        %v1168 = vadd.f32 %v1094, %v1135
        %v1169 = vadd.f32 %v1095, %v1149
        %v1170 = vadd.f32 %v1096, %v1163
        %1171 = vst [vmem:[%s636] sm:$0xff] %v1165
        %1172 = vst [vmem:[%s636 + $0x8] sm:$0xff] %v1166
        %1173 = vst [vmem:[%s636 + $0x10] sm:$0xff] %v1167
        %1174 = vst [vmem:[%s636 + $0x18] sm:$0xff] %v1168
        %1175 = vst [vmem:[%s636 + $0x20] sm:$0xff] %v1169
        %1176 = vst [vmem:[%s636 + $0x28] sm:$0xff] %v1170
        %v1177 = vld [vmem:[%s636] sm:$0xff]
        %v1178 = vld [vmem:[%s636 + $0x8] sm:$0xff]
        %v1179 = vld [vmem:[%s636 + $0x10] sm:$0xff]
        %v1180 = vld [vmem:[%s636 + $0x18] sm:$0xff]
        %v1181 = vld [vmem:[%s636 + $0x20] sm:$0xff]
        %v1182 = vld [vmem:[%s636 + $0x28] sm:$0xff]
        %s1183 = scalar_lea.vmem %s618, 48
        %v1184 = vld [vmem:[%s1183] sm:$0xf]
        %v1185 = vld [vmem:[%s1183 + $0x4] sm:$0xf]
        %v1188 = vunpack.c.l.b16 %v1184
        %v1189 = vunpack.c.l.b16 %v1185
        %v1190 = vpack.c.b16 %v1189, %v1188
        %1191 = vrot.lane.b32.xlu0 %v665, 92
        %v1192 = vpop.permute.xlu0 %1191
        %1193 = vrot.lane.b32.xlu0 %v666, 92
        %v1194 = vpop.permute.xlu0 %1193
        %1195 = vrot.lane.b32.xlu0 %v667, 92
        %v1196 = vpop.permute.xlu0 %1195
        %1197 = vrot.lane.b32.xlu0 %v675, 92
        %v1198 = vpop.permute.xlu0 %1197
        %vm1199 = vcmask 752640
        %v1200 = vsel %vm1199, %v1192, %v1194
        %v1201 = vsel %vm1199, %v1194, %v1196
        %v1202 = vsel %vm1199, %v1196, %v1198
        %v1207 = vsel %vm689, %v1190, 0
        %1209 = vmatpush.bf16.msra.mxu0 0
        %1210 = vmatpush.bf16.msra.mxu0 0
        %1211 = vmatpush.bf16.msra.mxu0 0
        %1212 = vmatpush.bf16.msra.mxu0 0
        %1213 = vmatpush.bf16.msra.mxu0 0
        %1214 = vmatpush.bf16.msra.mxu0 0
        %1215 = vmatpush.bf16.msra.mxu0 0
        %1216 = vmatpush.bf16.msra.mxu0 %v1200
        %1217 = vmatmul.bf16.gmra.mxu0 %v1207
        %v1218 = vpop.f32.mrf.mxu0
        %v1219 = vadd.f32 0.0, %v1218
        %v1220 = vpop.f32.mrf.mxu0
        %v1221 = vadd.f32 0.0, %v1220
        %1222 = vdwg.mxu0
        %1223 = vmatpush.bf16.msra.mxu0 0
        %1224 = vmatpush.bf16.msra.mxu0 0
        %1225 = vmatpush.bf16.msra.mxu0 0
        %1226 = vmatpush.bf16.msra.mxu0 0
        %1227 = vmatpush.bf16.msra.mxu0 0
        %1228 = vmatpush.bf16.msra.mxu0 0
        %1229 = vmatpush.bf16.msra.mxu0 0
        %1230 = vmatpush.bf16.msra.mxu0 %v1201
        %1231 = vmatmul.bf16.gmra.mxu0 %v1207
        %v1232 = vpop.f32.mrf.mxu0
        %v1233 = vadd.f32 0.0, %v1232
        %v1234 = vpop.f32.mrf.mxu0
        %v1235 = vadd.f32 0.0, %v1234
        %1236 = vdwg.mxu0
        %1237 = vmatpush.bf16.msra.mxu0 0
        %1238 = vmatpush.bf16.msra.mxu0 0
        %1239 = vmatpush.bf16.msra.mxu0 0
        %1240 = vmatpush.bf16.msra.mxu0 0
        %1241 = vmatpush.bf16.msra.mxu0 0
        %1242 = vmatpush.bf16.msra.mxu0 0
        %1243 = vmatpush.bf16.msra.mxu0 0
        %1244 = vmatpush.bf16.msra.mxu0 %v1202
        %1245 = vmatmul.bf16.gmra.mxu0 %v1207
        %v1246 = vpop.f32.mrf.mxu0
        %v1247 = vadd.f32 0.0, %v1246
        %v1248 = vpop.f32.mrf.mxu0
        %v1249 = vadd.f32 0.0, %v1248
        %1250 = vdwg.mxu0
        %v1251 = vadd.f32 %v1177, %v1219
        %v1252 = vadd.f32 %v1178, %v1233
        %v1253 = vadd.f32 %v1179, %v1247
        %v1254 = vadd.f32 %v1180, %v1221
        %v1255 = vadd.f32 %v1181, %v1235
        %v1256 = vadd.f32 %v1182, %v1249
        %1257 = vst [vmem:[%s636] sm:$0xff] %v1251
        %1258 = vst [vmem:[%s636 + $0x8] sm:$0xff] %v1252
        %1259 = vst [vmem:[%s636 + $0x10] sm:$0xff] %v1253
        %1260 = vst [vmem:[%s636 + $0x18] sm:$0xff] %v1254
        %1261 = vst [vmem:[%s636 + $0x20] sm:$0xff] %v1255
        %1262 = vst [vmem:[%s636 + $0x28] sm:$0xff] %v1256
        %v1263 = vld [vmem:[%s636] sm:$0xff]
        %v1264 = vld [vmem:[%s636 + $0x8] sm:$0xff]
        %v1265 = vld [vmem:[%s636 + $0x10] sm:$0xff]
        %v1266 = vld [vmem:[%s636 + $0x18] sm:$0xff]
        %v1267 = vld [vmem:[%s636 + $0x20] sm:$0xff]
        %v1268 = vld [vmem:[%s636 + $0x28] sm:$0xff]
        %s1269 = scalar_lea.vmem %s618, 56
        %v1270 = vld [vmem:[%s1269] sm:$0xf]
        %v1271 = vld [vmem:[%s1269 + $0x4] sm:$0xf]
        %v1274 = vunpack.c.l.b16 %v1270
        %v1275 = vunpack.c.l.b16 %v1271
        %v1276 = vpack.c.b16 %v1275, %v1274
        %1277 = vrot.lane.b32.xlu0 %v665, 91
        %v1278 = vpop.permute.xlu0 %1277
        %1279 = vrot.lane.b32.xlu0 %v666, 91
        %v1280 = vpop.permute.xlu0 %1279
        %1281 = vrot.lane.b32.xlu0 %v667, 91
        %v1282 = vpop.permute.xlu0 %1281
        %1283 = vrot.lane.b32.xlu0 %v675, 91
        %v1284 = vpop.permute.xlu0 %1283
        %vm1285 = vcmask 744448
        %v1286 = vsel %vm1285, %v1278, %v1280
        %v1287 = vsel %vm1285, %v1280, %v1282
        %v1288 = vsel %vm1285, %v1282, %v1284
        %v1293 = vsel %vm689, %v1276, 0
        %1295 = vmatpush.bf16.msra.mxu0 0
        %1296 = vmatpush.bf16.msra.mxu0 0
        %1297 = vmatpush.bf16.msra.mxu0 0
        %1298 = vmatpush.bf16.msra.mxu0 0
        %1299 = vmatpush.bf16.msra.mxu0 0
        %1300 = vmatpush.bf16.msra.mxu0 0
        %1301 = vmatpush.bf16.msra.mxu0 0
        %1302 = vmatpush.bf16.msra.mxu0 %v1286
        %1303 = vmatmul.bf16.gmra.mxu0 %v1293
        %v1304 = vpop.f32.mrf.mxu0
        %v1305 = vadd.f32 0.0, %v1304
        %v1306 = vpop.f32.mrf.mxu0
        %v1307 = vadd.f32 0.0, %v1306
        %1308 = vdwg.mxu0
        %1309 = vmatpush.bf16.msra.mxu0 0
        %1310 = vmatpush.bf16.msra.mxu0 0
        %1311 = vmatpush.bf16.msra.mxu0 0
        %1312 = vmatpush.bf16.msra.mxu0 0
        %1313 = vmatpush.bf16.msra.mxu0 0
        %1314 = vmatpush.bf16.msra.mxu0 0
        %1315 = vmatpush.bf16.msra.mxu0 0
        %1316 = vmatpush.bf16.msra.mxu0 %v1287
        %1317 = vmatmul.bf16.gmra.mxu0 %v1293
        %v1318 = vpop.f32.mrf.mxu0
        %v1319 = vadd.f32 0.0, %v1318
        %v1320 = vpop.f32.mrf.mxu0
        %v1321 = vadd.f32 0.0, %v1320
        %1322 = vdwg.mxu0
        %1323 = vmatpush.bf16.msra.mxu0 0
        %1324 = vmatpush.bf16.msra.mxu0 0
        %1325 = vmatpush.bf16.msra.mxu0 0
        %1326 = vmatpush.bf16.msra.mxu0 0
        %1327 = vmatpush.bf16.msra.mxu0 0
        %1328 = vmatpush.bf16.msra.mxu0 0
        %1329 = vmatpush.bf16.msra.mxu0 0
        %1330 = vmatpush.bf16.msra.mxu0 %v1288
        %1331 = vmatmul.bf16.gmra.mxu0 %v1293
        %v1332 = vpop.f32.mrf.mxu0
        %v1333 = vadd.f32 0.0, %v1332
        %v1334 = vpop.f32.mrf.mxu0
        %v1335 = vadd.f32 0.0, %v1334
        %1336 = vdwg.mxu0
        %v1337 = vadd.f32 %v1263, %v1305
        %v1338 = vadd.f32 %v1264, %v1319
        %v1339 = vadd.f32 %v1265, %v1333
        %v1340 = vadd.f32 %v1266, %v1307
        %v1341 = vadd.f32 %v1267, %v1321
        %v1342 = vadd.f32 %v1268, %v1335
        %1343 = vst [vmem:[%s636] sm:$0xff] %v1337
        %1344 = vst [vmem:[%s636 + $0x8] sm:$0xff] %v1338
        %1345 = vst [vmem:[%s636 + $0x10] sm:$0xff] %v1339
        %1346 = vst [vmem:[%s636 + $0x18] sm:$0xff] %v1340
        %1347 = vst [vmem:[%s636 + $0x20] sm:$0xff] %v1341
        %1348 = vst [vmem:[%s636 + $0x28] sm:$0xff] %v1342
        %v1349 = vld [vmem:[%s636] sm:$0xff]
        %v1350 = vld [vmem:[%s636 + $0x8] sm:$0xff]
        %v1351 = vld [vmem:[%s636 + $0x10] sm:$0xff]
        %v1352 = vld [vmem:[%s636 + $0x18] sm:$0xff]
        %v1353 = vld [vmem:[%s636 + $0x20] sm:$0xff]
        %v1354 = vld [vmem:[%s636 + $0x28] sm:$0xff]
        %s1355 = scalar_lea.vmem %s618, 64
        %v1356 = vld [vmem:[%s1355] sm:$0xf]
        %v1357 = vld [vmem:[%s1355 + $0x4] sm:$0xf]
        %v1360 = vunpack.c.l.b16 %v1356
        %v1361 = vunpack.c.l.b16 %v1357
        %v1362 = vpack.c.b16 %v1361, %v1360
        %1363 = vrot.lane.b32.xlu0 %v665, 90
        %v1364 = vpop.permute.xlu0 %1363
        %1365 = vrot.lane.b32.xlu0 %v666, 90
        %v1366 = vpop.permute.xlu0 %1365
        %1367 = vrot.lane.b32.xlu0 %v667, 90
        %v1368 = vpop.permute.xlu0 %1367
        %1369 = vrot.lane.b32.xlu0 %v675, 90
        %v1370 = vpop.permute.xlu0 %1369
        %vm1371 = vcmask 736256
        %v1372 = vsel %vm1371, %v1364, %v1366
        %v1373 = vsel %vm1371, %v1366, %v1368
        %v1374 = vsel %vm1371, %v1368, %v1370
        %v1379 = vsel %vm689, %v1362, 0
        %1381 = vmatpush.bf16.msra.mxu0 0
        %1382 = vmatpush.bf16.msra.mxu0 0
        %1383 = vmatpush.bf16.msra.mxu0 0
        %1384 = vmatpush.bf16.msra.mxu0 0
        %1385 = vmatpush.bf16.msra.mxu0 0
        %1386 = vmatpush.bf16.msra.mxu0 0
        %1387 = vmatpush.bf16.msra.mxu0 0
        %1388 = vmatpush.bf16.msra.mxu0 %v1372
        %1389 = vmatmul.bf16.gmra.mxu0 %v1379
        %v1390 = vpop.f32.mrf.mxu0
        %v1391 = vadd.f32 0.0, %v1390
        %v1392 = vpop.f32.mrf.mxu0
        %v1393 = vadd.f32 0.0, %v1392
        %1394 = vdwg.mxu0
        %1395 = vmatpush.bf16.msra.mxu0 0
        %1396 = vmatpush.bf16.msra.mxu0 0
        %1397 = vmatpush.bf16.msra.mxu0 0
        %1398 = vmatpush.bf16.msra.mxu0 0
        %1399 = vmatpush.bf16.msra.mxu0 0
        %1400 = vmatpush.bf16.msra.mxu0 0
        %1401 = vmatpush.bf16.msra.mxu0 0
        %1402 = vmatpush.bf16.msra.mxu0 %v1373
        %1403 = vmatmul.bf16.gmra.mxu0 %v1379
        %v1404 = vpop.f32.mrf.mxu0
        %v1405 = vadd.f32 0.0, %v1404
        %v1406 = vpop.f32.mrf.mxu0
        %v1407 = vadd.f32 0.0, %v1406
        %1408 = vdwg.mxu0
        %1409 = vmatpush.bf16.msra.mxu0 0
        %1410 = vmatpush.bf16.msra.mxu0 0
        %1411 = vmatpush.bf16.msra.mxu0 0
        %1412 = vmatpush.bf16.msra.mxu0 0
        %1413 = vmatpush.bf16.msra.mxu0 0
        %1414 = vmatpush.bf16.msra.mxu0 0
        %1415 = vmatpush.bf16.msra.mxu0 0
        %1416 = vmatpush.bf16.msra.mxu0 %v1374
        %1417 = vmatmul.bf16.gmra.mxu0 %v1379
        %v1418 = vpop.f32.mrf.mxu0
        %v1419 = vadd.f32 0.0, %v1418
        %v1420 = vpop.f32.mrf.mxu0
        %v1421 = vadd.f32 0.0, %v1420
        %1422 = vdwg.mxu0
        %v1423 = vadd.f32 %v1349, %v1391
        %v1424 = vadd.f32 %v1350, %v1405
        %v1425 = vadd.f32 %v1351, %v1419
        %v1426 = vadd.f32 %v1352, %v1393
        %v1427 = vadd.f32 %v1353, %v1407
        %v1428 = vadd.f32 %v1354, %v1421
        %1429 = vst [vmem:[%s636] sm:$0xff] %v1423
        %1430 = vst [vmem:[%s636 + $0x8] sm:$0xff] %v1424
        %1431 = vst [vmem:[%s636 + $0x10] sm:$0xff] %v1425
        %1432 = vst [vmem:[%s636 + $0x18] sm:$0xff] %v1426
        %1433 = vst [vmem:[%s636 + $0x20] sm:$0xff] %v1427
        %1434 = vst [vmem:[%s636 + $0x28] sm:$0xff] %v1428
        // Predicated region
        $region148: #{cond_conv_bn_relu6.1} parent=134 // pred_check
          %p1435 = pneg %p639
        $region149: #{cond_conv_bn_relu6.1} parent=134 // pred_check_branch
          %1437 = sbr.rel (%p1435) target = $region151
        $region150: #{cond_conv_bn_relu6.1} parent=134 // pred_region
          %v1438 = vld [vmem:[%s636] sm:$0xff]
          %v1439 = vld [vmem:[%s636 + $0x8] sm:$0xff]
          %v1440 = vld [vmem:[%s636 + $0x10] sm:$0xff]
          %v1441 = vld [vmem:[%s636 + $0x18] sm:$0xff]
          %v1442 = vld [vmem:[%s636 + $0x20] sm:$0xff]
          %v1443 = vld [vmem:[%s636 + $0x28] sm:$0xff]
          %v1444 = vld [vmem:[%s3] sm:$0xff]
          %v1445 = vld [vmem:[%s3 + $0x8] sm:$0xff]
          %1447 = vset.pattern.permute.xlu0 0
          %1448 = vperm.xlu0 %1447, %v1444
          %v1449 = vpop.permute.xlu0 %1448
          %1452 = vset.pattern.permute.xlu0 0
          %1453 = vperm.xlu0 %1452, %v1445
          %v1454 = vpop.permute.xlu0 %1453
          %v1456 = vadd.f32 %v1438, %v1449
          %v1457 = vadd.f32 %v1439, %v1449
          %v1458 = vadd.f32 %v1440, %v1449
          %v1459 = vadd.f32 %v1441, %v1454
          %v1460 = vadd.f32 %v1442, %v1454
          %v1461 = vadd.f32 %v1443, %v1454
          %v1462 = vmax.f32 %v1456, 0.0
          %v1463 = vmax.f32 %v1457, 0.0
          %v1464 = vmax.f32 %v1458, 0.0
          %v1465 = vmax.f32 %v1459, 0.0
          %v1466 = vmax.f32 %v1460, 0.0
          %v1467 = vmax.f32 %v1461, 0.0
          %v1468 = vmin.f32 %v1462, 6.0
          %v1469 = vmin.f32 %v1463, 6.0
          %v1470 = vmin.f32 %v1464, 6.0
          %v1471 = vmin.f32 %v1465, 6.0
          %v1472 = vmin.f32 %v1466, 6.0
          %v1473 = vmin.f32 %v1467, 6.0
          %1474 = vst [vmem:[%s636] sm:$0xff] %v1468
          %1475 = vst [vmem:[%s636 + $0x8] sm:$0xff] %v1469
          %1476 = vst [vmem:[%s636 + $0x10] sm:$0xff] %v1470
          %1477 = vst [vmem:[%s636 + $0x18] sm:$0xff] %v1471
          %1478 = vst [vmem:[%s636 + $0x20] sm:$0xff] %v1472
          %1479 = vst [vmem:[%s636 + $0x28] sm:$0xff] %v1473
        $region151: #{cond_conv_bn_relu6.1} parent=134 // pred_fallthru
          _
        %s1480 = smul.u32 3, %s21
        %p1481 = scmp.lt.s32.totalorder %s20, 1
        %s1482 = scalar_select %p1481, %s20, 1
        %p1483 = scmp.lt.s32.totalorder %s1480, 2
        %s1484 = scalar_select %p1483, %s1480, 2
        %s1485 = smul.addr %s1482, 6
        %s1486 = sadd.s32 %s1484, %s1485
        %s1487 = smul.addr %s1486, 8
        %s1488 = scalar_lea.vmem %s4, %s1487
        // Predicated region
        $region152: #{cond_conv_bn_relu6.1} parent=134 // pred_check
          %p1489 = pneg %p167
        $region153: #{cond_conv_bn_relu6.1} parent=134 // pred_check_branch
          %1491 = sbr.rel (%p1489) target = $region155
        $region154: #{cond_conv_bn_relu6.1} parent=134 // pred_region
          %s1492 = smul.u32 3, %s21
        $region155: #{cond_conv_bn_relu6.1} parent=134 // pred_fallthru
          _
      $region135: #{cond_conv_bn_relu6.1} parent=5 // pred_fallthru
        _
      %p1493 = scmp.le.s32.totalorder 2, %s10
      // Predicated region
      $region156: #{cond_conv_bn_relu6.1} parent=5 // pred_check
        %p1494 = pneg %p1493
      $region157: #{cond_conv_bn_relu6.1} parent=5 // pred_check_branch
        %1496 = sbr.rel (%p1494) target = $region159
      $region158: #{cond_conv_bn_relu6.1} parent=5 // pred_region
        %s1497 = ssub.s32 %s10, 2
        // Predicated region
        $region160: #{cond_conv_bn_relu6.1} parent=158 // pred_check
          %p1498 = pneg %p173
        $region161: #{cond_conv_bn_relu6.1} parent=158 // pred_check_branch
          %1500 = sbr.rel (%p1498) target = $region163
        $region162: #{cond_conv_bn_relu6.1} parent=158 // pred_region
          %s1501 = smul.u32 3, %s24
          %p1502 = scmp.lt.s32.totalorder %s23, 1
          %s1503 = scalar_select %p1502, %s23, 1
          %p1504 = scmp.lt.s32.totalorder %s1501, 2
          %s1505 = scalar_select %p1504, %s1501, 2
          %s1506 = smul.addr %s1503, 6
          %s1507 = sadd.s32 %s1505, %s1506
          %s1508 = smul.addr %s1507, 8
          %s1509 = scalar_lea.vmem %s4, %s1508
        $region163: #{cond_conv_bn_relu6.1} parent=158 // pred_fallthru
          _
      $region159: #{cond_conv_bn_relu6.1} parent=5 // pred_fallthru
        _
    $region6: #{cond_conv_bn_relu6.1} parent=1 // loop_footer
      %s14 = sadd.s32 1, %s10
    $region7: #{cond_conv_bn_relu6.1} parent=1 // loop_footer_branch
      %9 = sbr.rel target = $region3
    $region8: #{cond_conv_bn_relu6.1} parent=1 // loop_exit
      _

</llo_original>
